<compile_context>
chip_gen: v5e
topology: v5e:2x2
jax: 0.10.0
libtpu: 0.0.40
codegen_flags: <defaults>
</compile_context>

<pallas_src>
import jax
import jax.numpy as jnp
import numpy as np
from jax.experimental import pallas as pl
from jax.experimental.pallas import tpu as pltpu  # noqa: F401  (kept for TPU-specific tuning hooks)

# ----------------------------- model dims ----------------------------------
VOCAB_SIZE = 50
EMBED_SIZE = 32
HIDDEN_SIZE = 32
OUTPUT_SIZE = 50
N_LAYERS = 2

BATCH = 4
SEQ_LEN = 8


# ----------------------------- Pallas kernel -------------------------------
def decoder_lstm_kernel(emb_ref, h0_ref, c0_ref, w_ih0_ref, w_hh0_ref,
                        w_cat_ref, b_ref, w_fc_ref, b_fc_ref,
                        out_ref, hn_ref, cn_ref):
    T, Bp, E = emb_ref.shape
    L, _, H = h0_ref.shape
    O = w_fc_ref.shape[1]

    # ReLU over the whole sequence + hoisted layer-0 input projection:
    # one (T*Bp, E) @ (E, 4H) matmul instead of T tiny matmuls inside the loop.
    x_all = jnp.maximum(emb_ref[...], 0.0).reshape(T * Bp, E)
    pre0 = jnp.dot(x_all, w_ih0_ref[...],
                   preferred_element_type=jnp.float32).reshape(T, Bp, 4 * H)

    # Full-width (Bp, 4H) activation mask: lanes [2H, 3H) -> tanh (g gate),
    # everything else -> sigmoid (i, f, o).  Keeps the EUP/VPU work full-vreg-wide.
    lane = jax.lax.broadcasted_iota(jnp.int32, (Bp, 4 * H), 1)
    is_g = (lane >= 2 * H) & (lane < 3 * H)

    def lstm_cell(gates, c_prev):
        act = jnp.where(is_g, jnp.tanh(gates), jax.nn.sigmoid(gates))
        i_g = act[:, 0 * H:1 * H]
        f_g = act[:, 1 * H:2 * H]
        g_g = act[:, 2 * H:3 * H]
        o_g = act[:, 3 * H:4 * H]
        c_new = f_g * c_prev + i_g * g_g
        h_new = o_g * jnp.tanh(c_new)
        return h_new, c_new

    h = [h0_ref[l] for l in range(L)]
    c = [c0_ref[l] for l in range(L)]

    tops = []
    for t in range(T):  # T is small & static -> fully unrolled recurrence
        # Layer 0: input projection already hoisted, only h @ W_hh on the serial path.
        gates0 = (pre0[t]
                  + jnp.dot(h[0], w_hh0_ref[...], preferred_element_type=jnp.float32)
                  + b_ref[0])
        h[0], c[0] = lstm_cell(gates0, c[0])
        x = h[0]
        # Upper layers: W_ih/W_hh fused into a single (2H, 4H) matmul per layer.
        for l in range(1, L):
            xh = jnp.concatenate([x, h[l]], axis=-1)        # (Bp, 2H)
            gates = (jnp.dot(xh, w_cat_ref[l - 1],
                             preferred_element_type=jnp.float32)
                     + b_ref[l])
            h[l], c[l] = lstm_cell(gates, c[l])
            x = h[l]
        tops.append(x)

    # Hoisted FC: single (T*Bp, H) @ (H, O) matmul + bias, one output-slab store.
    h_top = jnp.stack(tops, axis=0).reshape(T * Bp, H)
    fc = (jnp.dot(h_top, w_fc_ref[...], preferred_element_type=jnp.float32)
          + b_fc_ref[...])
    out_ref[...] = fc.reshape(T, Bp, O)

    hn_ref[...] = jnp.stack(h, axis=0)
    cn_ref[...] = jnp.stack(c, axis=0)


# ----------------------------- wrapper --------------------------------------
def decoder_lstm_forward(decoder_inputs, hidden, params):
    """decoder_inputs: (B, T) int32 tokens; hidden = (h0, c0) each (L, B, H)."""
    h0, c0 = hidden
    B, T = decoder_inputs.shape
    L, _, H = h0.shape
    E = params["embedding"].shape[1]
    O = params["w_fc"].shape[1]
    assert E == H, "stacked-weight kernel requires embedding_size == hidden_size"

    # Embedding lookup is glue (pure gather) — done in plain JAX, time-major, so no
    # float transpose is needed on the input side.
    embeds_tm = jnp.take(params["embedding"], decoder_inputs.T, axis=0)  # (T, B, E)

    # Pad the batch (sublane) dimension to a multiple of 8 for tile alignment.
    Bp = ((B + 7) // 8) * 8
    pad = Bp - B
    if pad:
        embeds_tm = jnp.pad(embeds_tm, ((0, 0), (0, pad), (0, 0)))
        h0p = jnp.pad(h0, ((0, 0), (0, pad), (0, 0)))
        c0p = jnp.pad(c0, ((0, 0), (0, pad), (0, 0)))
    else:
        h0p, c0p = h0, c0

    # Weight packing: layer-0 input projection separated (hoisted pre-matmul),
    # layers >= 1 get W_ih/W_hh fused along the input dim.
    w_ih0 = params["w_ih"][0]                                         # (E, 4H)
    w_hh0 = params["w_hh"][0]                                         # (H, 4H)
    if L > 1:
        w_cat = jnp.concatenate([params["w_ih"][1:],
                                 params["w_hh"][1:]], axis=1)         # (L-1, 2H, 4H)
    else:
        w_cat = jnp.zeros((1, 2 * H, 4 * H), jnp.float32)             # unused dummy

    out_tm, h_n, c_n = pl.pallas_call(
        decoder_lstm_kernel,
        out_shape=(
            jax.ShapeDtypeStruct((T, Bp, O), jnp.float32),
            jax.ShapeDtypeStruct((L, Bp, H), jnp.float32),
            jax.ShapeDtypeStruct((L, Bp, H), jnp.float32),
        ),
    )(embeds_tm, h0p, c0p, w_ih0, w_hh0, w_cat,
      params["b"], params["w_fc"], params["b_fc"])

    out = jnp.transpose(out_tm[:, :B, :], (1, 0, 2))   # back to batch_first (B, T, O)
    return out, (h_n[:, :B, :], c_n[:, :B, :])


# ----------------------------- pure-JAX reference ---------------------------
def reference_forward(decoder_inputs, hidden, params):
    h0, c0 = hidden
    H = h0.shape[-1]
    embeds = jnp.take(params["embedding"], decoder_inputs, axis=0)
    x_seq = jnp.maximum(embeds, 0.0)                  # (B, T, E)
    B, T, _ = x_seq.shape
    L = h0.shape[0]
    h = [h0[l] for l in range(L)]
    c = [c0[l] for l in range(L)]
    outs = []
    for t in range(T):
        x = x_seq[:, t, :]
        for l in range(L):
            gates = (x @ params["w_ih"][l] + h[l] @ params["w_hh"][l]
                     + params["b"][l, 0])
            i_g = jax.nn.sigmoid(gates[:, 0 * H:1 * H])
            f_g = jax.nn.sigmoid(gates[:, 1 * H:2 * H])
            g_g = jnp.tanh(gates[:, 2 * H:3 * H])
            o_g = jax.nn.sigmoid(gates[:, 3 * H:4 * H])
            c[l] = f_g * c[l] + i_g * g_g
            h[l] = o_g * jnp.tanh(c[l])
            x = h[l]
        outs.append(x @ params["w_fc"] + params["b_fc"][0])
    out = jnp.stack(outs, axis=1)
    return out, (jnp.stack(h, axis=0), jnp.stack(c, axis=0))


# ----------------------------- parameter init -------------------------------
def init_params(key):
    ks = jax.random.split(key, 6)
    scale = 0.1
    return {
        "embedding": scale * jax.random.normal(ks[0], (VOCAB_SIZE, EMBED_SIZE), jnp.float32),
        # W_ih stacked over layers: layer 0 consumes E (== H), others consume H.
        "w_ih": scale * jax.random.normal(ks[1], (N_LAYERS, HIDDEN_SIZE, 4 * HIDDEN_SIZE), jnp.float32),
        "w_hh": scale * jax.random.normal(ks[2], (N_LAYERS, HIDDEN_SIZE, 4 * HIDDEN_SIZE), jnp.float32),
        # combined bias (b_ih + b_hh), kept 2D per layer for TPU-friendly layout
        "b": scale * jax.random.normal(ks[3], (N_LAYERS, 1, 4 * HIDDEN_SIZE), jnp.float32),
        "w_fc": scale * jax.random.normal(ks[4], (HIDDEN_SIZE, OUTPUT_SIZE), jnp.float32),
        "b_fc": scale * jax.random.normal(ks[5], (1, OUTPUT_SIZE), jnp.float32),
    }


if __name__ == "__main__":
    key = jax.random.PRNGKey(0)
    k_tok, k_h, k_c, k_p = jax.random.split(key, 4)

    decoder_inputs = jax.random.randint(k_tok, (BATCH, SEQ_LEN), 0, VOCAB_SIZE, jnp.int32)
    h0 = 0.1 * jax.random.normal(k_h, (N_LAYERS, BATCH, HIDDEN_SIZE), jnp.float32)
    c0 = 0.1 * jax.random.normal(k_c, (N_LAYERS, BATCH, HIDDEN_SIZE), jnp.float32)
    params = init_params(k_p)

    forward = jax.jit(decoder_lstm_forward)
    out, (h_n, c_n) = forward(decoder_inputs, (h0, c0), params)
    jax.block_until_ready((out, h_n, c_n))

    # Sanity check against a pure-JAX reference of the same math.
    out_ref, (h_ref, c_ref) = reference_forward(decoder_inputs, (h0, c0), params)
    np.testing.assert_allclose(np.asarray(out), np.asarray(out_ref), rtol=1e-5, atol=1e-5)
    np.testing.assert_allclose(np.asarray(h_n), np.asarray(h_ref), rtol=1e-5, atol=1e-5)
    np.testing.assert_allclose(np.asarray(c_n), np.asarray(c_ref), rtol=1e-5, atol=1e-5)

    print("KERNEL_OK")
</pallas_src>

<mosaic_0001>
module attributes {stable_mosaic.version = 11 : i64} {
  func.func @decoder_lstm_kernel(%arg0: memref<8x8x32xf32, #tpu.memory_space<vmem>>, %arg1: memref<2x8x32xf32, #tpu.memory_space<vmem>>, %arg2: memref<2x8x32xf32, #tpu.memory_space<vmem>>, %arg3: memref<32x128xf32, #tpu.memory_space<vmem>>, %arg4: memref<32x128xf32, #tpu.memory_space<vmem>>, %arg5: memref<1x64x128xf32, #tpu.memory_space<vmem>>, %arg6: memref<2x1x128xf32, #tpu.memory_space<vmem>>, %arg7: memref<32x50xf32, #tpu.memory_space<vmem>>, %arg8: memref<1x50xf32, #tpu.memory_space<vmem>>, %arg9: memref<8x8x50xf32, #tpu.memory_space<vmem>>, %arg10: memref<2x8x32xf32, #tpu.memory_space<vmem>>, %arg11: memref<2x8x32xf32, #tpu.memory_space<vmem>>) attributes {dimension_semantics = [], scalar_prefetch = 0 : i64, scratch_operands = 0 : i64, tpu.core_type = #tpu.core_type<tc>} {
    %c0 = arith.constant 0 : index
    %c0_0 = arith.constant 0 : index
    %c0_1 = arith.constant 0 : index
    %0 = vector.load %arg0[%c0, %c0_0, %c0_1] : memref<8x8x32xf32, #tpu.memory_space<vmem>>, vector<8x8x32xf32>
    %cst = arith.constant 0.000000e+00 : f32
    %1 = vector.broadcast %cst : f32 to vector<8x8x32xf32>
    %2 = arith.maximumf %0, %1 : vector<8x8x32xf32>
    %3 = vector.shape_cast %2 : vector<8x8x32xf32> to vector<64x32xf32>
    %c0_2 = arith.constant 0 : index
    %c0_3 = arith.constant 0 : index
    %4 = vector.load %arg3[%c0_2, %c0_3] : memref<32x128xf32, #tpu.memory_space<vmem>>, vector<32x128xf32>
    %cst_4 = arith.constant dense<0.000000e+00> : vector<64x128xf32>
    %5 = tpu.matmul %3, %4, %cst_4 {dimension_numbers = #tpu.dot_dimension_numbers<[1], [0], [0], [1], [0, 0, 1, 1], [], []>} : vector<64x32xf32>, vector<32x128xf32>, vector<64x128xf32> -> vector<64x128xf32>
    %6 = vector.shape_cast %5 : vector<64x128xf32> to vector<8x8x128xf32>
    %7 = tpu.iota {dimensions = array<i32: 1>} : vector<8x128xi32>
    %c64_i32 = arith.constant 64 : i32
    %8 = vector.broadcast %c64_i32 : i32 to vector<8x128xi32>
    %9 = arith.cmpi sge, %7, %8 : vector<8x128xi32>
    %c96_i32 = arith.constant 96 : i32
    %10 = vector.broadcast %c96_i32 : i32 to vector<8x128xi32>
    %11 = arith.cmpi slt, %7, %10 : vector<8x128xi32>
    %12 = arith.andi %9, %11 : vector<8x128xi1>
    %c0_5 = arith.constant 0 : index
    %c0_6 = arith.constant 0 : index
    %c0_7 = arith.constant 0 : index
    %13 = vector.load %arg1[%c0_5, %c0_6, %c0_7] : memref<2x8x32xf32, #tpu.memory_space<vmem>>, vector<1x8x32xf32>
    %14 = vector.shape_cast %13 : vector<1x8x32xf32> to vector<8x32xf32>
    %c1 = arith.constant 1 : index
    %c0_8 = arith.constant 0 : index
    %c0_9 = arith.constant 0 : index
    %15 = vector.load %arg1[%c1, %c0_8, %c0_9] : memref<2x8x32xf32, #tpu.memory_space<vmem>>, vector<1x8x32xf32>
    %16 = vector.shape_cast %15 : vector<1x8x32xf32> to vector<8x32xf32>
    %c0_10 = arith.constant 0 : index
    %c0_11 = arith.constant 0 : index
    %c0_12 = arith.constant 0 : index
    %17 = vector.load %arg2[%c0_10, %c0_11, %c0_12] : memref<2x8x32xf32, #tpu.memory_space<vmem>>, vector<1x8x32xf32>
    %18 = vector.shape_cast %17 : vector<1x8x32xf32> to vector<8x32xf32>
    %c1_13 = arith.constant 1 : index
    %c0_14 = arith.constant 0 : index
    %c0_15 = arith.constant 0 : index
    %19 = vector.load %arg2[%c1_13, %c0_14, %c0_15] : memref<2x8x32xf32, #tpu.memory_space<vmem>>, vector<1x8x32xf32>
    %20 = vector.shape_cast %19 : vector<1x8x32xf32> to vector<8x32xf32>
    %21 = vector.extract_strided_slice %6 {offsets = [0, 0, 0], sizes = [1, 8, 128], strides = [1, 1, 1]} : vector<8x8x128xf32> to vector<1x8x128xf32>
    %22 = vector.shape_cast %21 : vector<1x8x128xf32> to vector<8x128xf32>
    %c0_16 = arith.constant 0 : index
    %c0_17 = arith.constant 0 : index
    %23 = vector.load %arg4[%c0_16, %c0_17] : memref<32x128xf32, #tpu.memory_space<vmem>>, vector<32x128xf32>
    %cst_18 = arith.constant dense<0.000000e+00> : vector<8x128xf32>
    %24 = tpu.matmul %14, %23, %cst_18 {dimension_numbers = #tpu.dot_dimension_numbers<[1], [0], [0], [1], [0, 0, 1, 1], [], []>} : vector<8x32xf32>, vector<32x128xf32>, vector<8x128xf32> -> vector<8x128xf32>
    %25 = arith.addf %22, %24 : vector<8x128xf32>
    %c0_19 = arith.constant 0 : index
    %c0_20 = arith.constant 0 : index
    %c0_21 = arith.constant 0 : index
    %26 = vector.load %arg6[%c0_19, %c0_20, %c0_21] : memref<2x1x128xf32, #tpu.memory_space<vmem>>, vector<1x1x128xf32>
    %27 = vector.shape_cast %26 : vector<1x1x128xf32> to vector<1x128xf32>
    %28 = vector.broadcast %27 : vector<1x128xf32> to vector<8x128xf32>
    %29 = arith.addf %25, %28 : vector<8x128xf32>
    %30 = math.tanh %29 : vector<8x128xf32>
    %31 = arith.negf %29 : vector<8x128xf32>
    %32 = math.exp %31 : vector<8x128xf32>
    %cst_22 = arith.constant 1.000000e+00 : f32
    %33 = vector.broadcast %cst_22 : f32 to vector<8x128xf32>
    %34 = arith.addf %33, %32 : vector<8x128xf32>
    %35 = arith.divf %33, %34 : vector<8x128xf32>
    %36 = arith.select %12, %30, %35 : vector<8x128xi1>, vector<8x128xf32>
    %37 = vector.extract_strided_slice %36 {offsets = [0, 0], sizes = [8, 32], strides = [1, 1]} : vector<8x128xf32> to vector<8x32xf32>
    %38 = vector.extract_strided_slice %36 {offsets = [0, 32], sizes = [8, 32], strides = [1, 1]} : vector<8x128xf32> to vector<8x32xf32>
    %39 = vector.extract_strided_slice %36 {offsets = [0, 64], sizes = [8, 32], strides = [1, 1]} : vector<8x128xf32> to vector<8x32xf32>
    %40 = vector.extract_strided_slice %36 {offsets = [0, 96], sizes = [8, 32], strides = [1, 1]} : vector<8x128xf32> to vector<8x32xf32>
    %41 = arith.mulf %38, %18 : vector<8x32xf32>
    %42 = arith.mulf %37, %39 : vector<8x32xf32>
    %43 = arith.addf %41, %42 : vector<8x32xf32>
    %44 = math.tanh %43 : vector<8x32xf32>
    %45 = arith.mulf %40, %44 : vector<8x32xf32>
    %46 = tpu.concatenate %45, %16 in 1 : vector<8x32xf32>, vector<8x32xf32> -> vector<8x64xf32>
    %c0_23 = arith.constant 0 : index
    %c0_24 = arith.constant 0 : index
    %c0_25 = arith.constant 0 : index
    %47 = vector.load %arg5[%c0_23, %c0_24, %c0_25] : memref<1x64x128xf32, #tpu.memory_space<vmem>>, vector<1x64x128xf32>
    %48 = vector.shape_cast %47 : vector<1x64x128xf32> to vector<64x128xf32>
    %cst_26 = arith.constant dense<0.000000e+00> : vector<8x128xf32>
    %49 = tpu.matmul %46, %48, %cst_26 {dimension_numbers = #tpu.dot_dimension_numbers<[1], [0], [0], [1], [0, 0, 1, 1], [], []>} : vector<8x64xf32>, vector<64x128xf32>, vector<8x128xf32> -> vector<8x128xf32>
    %c1_27 = arith.constant 1 : index
    %c0_28 = arith.constant 0 : index
    %c0_29 = arith.constant 0 : index
    %50 = vector.load %arg6[%c1_27, %c0_28, %c0_29] : memref<2x1x128xf32, #tpu.memory_space<vmem>>, vector<1x1x128xf32>
    %51 = vector.shape_cast %50 : vector<1x1x128xf32> to vector<1x128xf32>
    %52 = vector.broadcast %51 : vector<1x128xf32> to vector<8x128xf32>
    %53 = arith.addf %49, %52 : vector<8x128xf32>
    %54 = math.tanh %53 : vector<8x128xf32>
    %55 = arith.negf %53 : vector<8x128xf32>
    %56 = math.exp %55 : vector<8x128xf32>
    %cst_30 = arith.constant 1.000000e+00 : f32
    %57 = vector.broadcast %cst_30 : f32 to vector<8x128xf32>
    %58 = arith.addf %57, %56 : vector<8x128xf32>
    %59 = arith.divf %57, %58 : vector<8x128xf32>
    %60 = arith.select %12, %54, %59 : vector<8x128xi1>, vector<8x128xf32>
    %61 = vector.extract_strided_slice %60 {offsets = [0, 0], sizes = [8, 32], strides = [1, 1]} : vector<8x128xf32> to vector<8x32xf32>
    %62 = vector.extract_strided_slice %60 {offsets = [0, 32], sizes = [8, 32], strides = [1, 1]} : vector<8x128xf32> to vector<8x32xf32>
    %63 = vector.extract_strided_slice %60 {offsets = [0, 64], sizes = [8, 32], strides = [1, 1]} : vector<8x128xf32> to vector<8x32xf32>
    %64 = vector.extract_strided_slice %60 {offsets = [0, 96], sizes = [8, 32], strides = [1, 1]} : vector<8x128xf32> to vector<8x32xf32>
    %65 = arith.mulf %62, %20 : vector<8x32xf32>
    %66 = arith.mulf %61, %63 : vector<8x32xf32>
    %67 = arith.addf %65, %66 : vector<8x32xf32>
    %68 = math.tanh %67 : vector<8x32xf32>
    %69 = arith.mulf %64, %68 : vector<8x32xf32>
    %70 = vector.extract_strided_slice %6 {offsets = [1, 0, 0], sizes = [1, 8, 128], strides = [1, 1, 1]} : vector<8x8x128xf32> to vector<1x8x128xf32>
    %71 = vector.shape_cast %70 : vector<1x8x128xf32> to vector<8x128xf32>
    %c0_31 = arith.constant 0 : index
    %c0_32 = arith.constant 0 : index
    %72 = vector.load %arg4[%c0_31, %c0_32] : memref<32x128xf32, #tpu.memory_space<vmem>>, vector<32x128xf32>
    %cst_33 = arith.constant dense<0.000000e+00> : vector<8x128xf32>
    %73 = tpu.matmul %45, %72, %cst_33 {dimension_numbers = #tpu.dot_dimension_numbers<[1], [0], [0], [1], [0, 0, 1, 1], [], []>} : vector<8x32xf32>, vector<32x128xf32>, vector<8x128xf32> -> vector<8x128xf32>
    %74 = arith.addf %71, %73 : vector<8x128xf32>
    %c0_34 = arith.constant 0 : index
    %c0_35 = arith.constant 0 : index
    %c0_36 = arith.constant 0 : index
    %75 = vector.load %arg6[%c0_34, %c0_35, %c0_36] : memref<2x1x128xf32, #tpu.memory_space<vmem>>, vector<1x1x128xf32>
    %76 = vector.shape_cast %75 : vector<1x1x128xf32> to vector<1x128xf32>
    %77 = vector.broadcast %76 : vector<1x128xf32> to vector<8x128xf32>
    %78 = arith.addf %74, %77 : vector<8x128xf32>
    %79 = math.tanh %78 : vector<8x128xf32>
    %80 = arith.negf %78 : vector<8x128xf32>
    %81 = math.exp %80 : vector<8x128xf32>
    %cst_37 = arith.constant 1.000000e+00 : f32
    %82 = vector.broadcast %cst_37 : f32 to vector<8x128xf32>
    %83 = arith.addf %82, %81 : vector<8x128xf32>
    %84 = arith.divf %82, %83 : vector<8x128xf32>
    %85 = arith.select %12, %79, %84 : vector<8x128xi1>, vector<8x128xf32>
    %86 = vector.extract_strided_slice %85 {offsets = [0, 0], sizes = [8, 32], strides = [1, 1]} : vector<8x128xf32> to vector<8x32xf32>
    %87 = vector.extract_strided_slice %85 {offsets = [0, 32], sizes = [8, 32], strides = [1, 1]} : vector<8x128xf32> to vector<8x32xf32>
    %88 = vector.extract_strided_slice %85 {offsets = [0, 64], sizes = [8, 32], strides = [1, 1]} : vector<8x128xf32> to vector<8x32xf32>
    %89 = vector.extract_strided_slice %85 {offsets = [0, 96], sizes = [8, 32], strides = [1, 1]} : vector<8x128xf32> to vector<8x32xf32>
    %90 = arith.mulf %87, %43 : vector<8x32xf32>
    %91 = arith.mulf %86, %88 : vector<8x32xf32>
    %92 = arith.addf %90, %91 : vector<8x32xf32>
    %93 = math.tanh %92 : vector<8x32xf32>
    %94 = arith.mulf %89, %93 : vector<8x32xf32>
    %95 = tpu.concatenate %94, %69 in 1 : vector<8x32xf32>, vector<8x32xf32> -> vector<8x64xf32>
    %c0_38 = arith.constant 0 : index
    %c0_39 = arith.constant 0 : index
    %c0_40 = arith.constant 0 : index
    %96 = vector.load %arg5[%c0_38, %c0_39, %c0_40] : memref<1x64x128xf32, #tpu.memory_space<vmem>>, vector<1x64x128xf32>
    %97 = vector.shape_cast %96 : vector<1x64x128xf32> to vector<64x128xf32>
    %cst_41 = arith.constant dense<0.000000e+00> : vector<8x128xf32>
    %98 = tpu.matmul %95, %97, %cst_41 {dimension_numbers = #tpu.dot_dimension_numbers<[1], [0], [0], [1], [0, 0, 1, 1], [], []>} : vector<8x64xf32>, vector<64x128xf32>, vector<8x128xf32> -> vector<8x128xf32>
    %c1_42 = arith.constant 1 : index
    %c0_43 = arith.constant 0 : index
    %c0_44 = arith.constant 0 : index
    %99 = vector.load %arg6[%c1_42, %c0_43, %c0_44] : memref<2x1x128xf32, #tpu.memory_space<vmem>>, vector<1x1x128xf32>
    %100 = vector.shape_cast %99 : vector<1x1x128xf32> to vector<1x128xf32>
    %101 = vector.broadcast %100 : vector<1x128xf32> to vector<8x128xf32>
    %102 = arith.addf %98, %101 : vector<8x128xf32>
    %103 = math.tanh %102 : vector<8x128xf32>
    %104 = arith.negf %102 : vector<8x128xf32>
    %105 = math.exp %104 : vector<8x128xf32>
    %cst_45 = arith.constant 1.000000e+00 : f32
    %106 = vector.broadcast %cst_45 : f32 to vector<8x128xf32>
    %107 = arith.addf %106, %105 : vector<8x128xf32>
    %108 = arith.divf %106, %107 : vector<8x128xf32>
    %109 = arith.select %12, %103, %108 : vector<8x128xi1>, vector<8x128xf32>
    %110 = vector.extract_strided_slice %109 {offsets = [0, 0], sizes = [8, 32], strides = [1, 1]} : vector<8x128xf32> to vector<8x32xf32>
    %111 = vector.extract_strided_slice %109 {offsets = [0, 32], sizes = [8, 32], strides = [1, 1]} : vector<8x128xf32> to vector<8x32xf32>
    %112 = vector.extract_strided_slice %109 {offsets = [0, 64], sizes = [8, 32], strides = [1, 1]} : vector<8x128xf32> to vector<8x32xf32>
    %113 = vector.extract_strided_slice %109 {offsets = [0, 96], sizes = [8, 32], strides = [1, 1]} : vector<8x128xf32> to vector<8x32xf32>
    %114 = arith.mulf %111, %67 : vector<8x32xf32>
    %115 = arith.mulf %110, %112 : vector<8x32xf32>
    %116 = arith.addf %114, %115 : vector<8x32xf32>
    %117 = math.tanh %116 : vector<8x32xf32>
    %118 = arith.mulf %113, %117 : vector<8x32xf32>
    %119 = vector.extract_strided_slice %6 {offsets = [2, 0, 0], sizes = [1, 8, 128], strides = [1, 1, 1]} : vector<8x8x128xf32> to vector<1x8x128xf32>
    %120 = vector.shape_cast %119 : vector<1x8x128xf32> to vector<8x128xf32>
    %c0_46 = arith.constant 0 : index
    %c0_47 = arith.constant 0 : index
    %121 = vector.load %arg4[%c0_46, %c0_47] : memref<32x128xf32, #tpu.memory_space<vmem>>, vector<32x128xf32>
    %cst_48 = arith.constant dense<0.000000e+00> : vector<8x128xf32>
    %122 = tpu.matmul %94, %121, %cst_48 {dimension_numbers = #tpu.dot_dimension_numbers<[1], [0], [0], [1], [0, 0, 1, 1], [], []>} : vector<8x32xf32>, vector<32x128xf32>, vector<8x128xf32> -> vector<8x128xf32>
    %123 = arith.addf %120, %122 : vector<8x128xf32>
    %c0_49 = arith.constant 0 : index
    %c0_50 = arith.constant 0 : index
    %c0_51 = arith.constant 0 : index
    %124 = vector.load %arg6[%c0_49, %c0_50, %c0_51] : memref<2x1x128xf32, #tpu.memory_space<vmem>>, vector<1x1x128xf32>
    %125 = vector.shape_cast %124 : vector<1x1x128xf32> to vector<1x128xf32>
    %126 = vector.broadcast %125 : vector<1x128xf32> to vector<8x128xf32>
    %127 = arith.addf %123, %126 : vector<8x128xf32>
    %128 = math.tanh %127 : vector<8x128xf32>
    %129 = arith.negf %127 : vector<8x128xf32>
    %130 = math.exp %129 : vector<8x128xf32>
    %cst_52 = arith.constant 1.000000e+00 : f32
    %131 = vector.broadcast %cst_52 : f32 to vector<8x128xf32>
    %132 = arith.addf %131, %130 : vector<8x128xf32>
    %133 = arith.divf %131, %132 : vector<8x128xf32>
    %134 = arith.select %12, %128, %133 : vector<8x128xi1>, vector<8x128xf32>
    %135 = vector.extract_strided_slice %134 {offsets = [0, 0], sizes = [8, 32], strides = [1, 1]} : vector<8x128xf32> to vector<8x32xf32>
    %136 = vector.extract_strided_slice %134 {offsets = [0, 32], sizes = [8, 32], strides = [1, 1]} : vector<8x128xf32> to vector<8x32xf32>
    %137 = vector.extract_strided_slice %134 {offsets = [0, 64], sizes = [8, 32], strides = [1, 1]} : vector<8x128xf32> to vector<8x32xf32>
    %138 = vector.extract_strided_slice %134 {offsets = [0, 96], sizes = [8, 32], strides = [1, 1]} : vector<8x128xf32> to vector<8x32xf32>
    %139 = arith.mulf %136, %92 : vector<8x32xf32>
    %140 = arith.mulf %135, %137 : vector<8x32xf32>
    %141 = arith.addf %139, %140 : vector<8x32xf32>
    %142 = math.tanh %141 : vector<8x32xf32>
    %143 = arith.mulf %138, %142 : vector<8x32xf32>
    %144 = tpu.concatenate %143, %118 in 1 : vector<8x32xf32>, vector<8x32xf32> -> vector<8x64xf32>
    %c0_53 = arith.constant 0 : index
    %c0_54 = arith.constant 0 : index
    %c0_55 = arith.constant 0 : index
    %145 = vector.load %arg5[%c0_53, %c0_54, %c0_55] : memref<1x64x128xf32, #tpu.memory_space<vmem>>, vector<1x64x128xf32>
    %146 = vector.shape_cast %145 : vector<1x64x128xf32> to vector<64x128xf32>
    %cst_56 = arith.constant dense<0.000000e+00> : vector<8x128xf32>
    %147 = tpu.matmul %144, %146, %cst_56 {dimension_numbers = #tpu.dot_dimension_numbers<[1], [0], [0], [1], [0, 0, 1, 1], [], []>} : vector<8x64xf32>, vector<64x128xf32>, vector<8x128xf32> -> vector<8x128xf32>
    %c1_57 = arith.constant 1 : index
    %c0_58 = arith.constant 0 : index
    %c0_59 = arith.constant 0 : index
    %148 = vector.load %arg6[%c1_57, %c0_58, %c0_59] : memref<2x1x128xf32, #tpu.memory_space<vmem>>, vector<1x1x128xf32>
    %149 = vector.shape_cast %148 : vector<1x1x128xf32> to vector<1x128xf32>
    %150 = vector.broadcast %149 : vector<1x128xf32> to vector<8x128xf32>
    %151 = arith.addf %147, %150 : vector<8x128xf32>
    %152 = math.tanh %151 : vector<8x128xf32>
    %153 = arith.negf %151 : vector<8x128xf32>
    %154 = math.exp %153 : vector<8x128xf32>
    %cst_60 = arith.constant 1.000000e+00 : f32
    %155 = vector.broadcast %cst_60 : f32 to vector<8x128xf32>
    %156 = arith.addf %155, %154 : vector<8x128xf32>
    %157 = arith.divf %155, %156 : vector<8x128xf32>
    %158 = arith.select %12, %152, %157 : vector<8x128xi1>, vector<8x128xf32>
    %159 = vector.extract_strided_slice %158 {offsets = [0, 0], sizes = [8, 32], strides = [1, 1]} : vector<8x128xf32> to vector<8x32xf32>
    %160 = vector.extract_strided_slice %158 {offsets = [0, 32], sizes = [8, 32], strides = [1, 1]} : vector<8x128xf32> to vector<8x32xf32>
    %161 = vector.extract_strided_slice %158 {offsets = [0, 64], sizes = [8, 32], strides = [1, 1]} : vector<8x128xf32> to vector<8x32xf32>
    %162 = vector.extract_strided_slice %158 {offsets = [0, 96], sizes = [8, 32], strides = [1, 1]} : vector<8x128xf32> to vector<8x32xf32>
    %163 = arith.mulf %160, %116 : vector<8x32xf32>
    %164 = arith.mulf %159, %161 : vector<8x32xf32>
    %165 = arith.addf %163, %164 : vector<8x32xf32>
    %166 = math.tanh %165 : vector<8x32xf32>
    %167 = arith.mulf %162, %166 : vector<8x32xf32>
    %168 = vector.extract_strided_slice %6 {offsets = [3, 0, 0], sizes = [1, 8, 128], strides = [1, 1, 1]} : vector<8x8x128xf32> to vector<1x8x128xf32>
    %169 = vector.shape_cast %168 : vector<1x8x128xf32> to vector<8x128xf32>
    %c0_61 = arith.constant 0 : index
    %c0_62 = arith.constant 0 : index
    %170 = vector.load %arg4[%c0_61, %c0_62] : memref<32x128xf32, #tpu.memory_space<vmem>>, vector<32x128xf32>
    %cst_63 = arith.constant dense<0.000000e+00> : vector<8x128xf32>
    %171 = tpu.matmul %143, %170, %cst_63 {dimension_numbers = #tpu.dot_dimension_numbers<[1], [0], [0], [1], [0, 0, 1, 1], [], []>} : vector<8x32xf32>, vector<32x128xf32>, vector<8x128xf32> -> vector<8x128xf32>
    %172 = arith.addf %169, %171 : vector<8x128xf32>
    %c0_64 = arith.constant 0 : index
    %c0_65 = arith.constant 0 : index
    %c0_66 = arith.constant 0 : index
    %173 = vector.load %arg6[%c0_64, %c0_65, %c0_66] : memref<2x1x128xf32, #tpu.memory_space<vmem>>, vector<1x1x128xf32>
    %174 = vector.shape_cast %173 : vector<1x1x128xf32> to vector<1x128xf32>
    %175 = vector.broadcast %174 : vector<1x128xf32> to vector<8x128xf32>
    %176 = arith.addf %172, %175 : vector<8x128xf32>
    %177 = math.tanh %176 : vector<8x128xf32>
    %178 = arith.negf %176 : vector<8x128xf32>
    %179 = math.exp %178 : vector<8x128xf32>
    %cst_67 = arith.constant 1.000000e+00 : f32
    %180 = vector.broadcast %cst_67 : f32 to vector<8x128xf32>
    %181 = arith.addf %180, %179 : vector<8x128xf32>
    %182 = arith.divf %180, %181 : vector<8x128xf32>
    %183 = arith.select %12, %177, %182 : vector<8x128xi1>, vector<8x128xf32>
    %184 = vector.extract_strided_slice %183 {offsets = [0, 0], sizes = [8, 32], strides = [1, 1]} : vector<8x128xf32> to vector<8x32xf32>
    %185 = vector.extract_strided_slice %183 {offsets = [0, 32], sizes = [8, 32], strides = [1, 1]} : vector<8x128xf32> to vector<8x32xf32>
    %186 = vector.extract_strided_slice %183 {offsets = [0, 64], sizes = [8, 32], strides = [1, 1]} : vector<8x128xf32> to vector<8x32xf32>
    %187 = vector.extract_strided_slice %183 {offsets = [0, 96], sizes = [8, 32], strides = [1, 1]} : vector<8x128xf32> to vector<8x32xf32>
    %188 = arith.mulf %185, %141 : vector<8x32xf32>
    %189 = arith.mulf %184, %186 : vector<8x32xf32>
    %190 = arith.addf %188, %189 : vector<8x32xf32>
    %191 = math.tanh %190 : vector<8x32xf32>
    %192 = arith.mulf %187, %191 : vector<8x32xf32>
    %193 = tpu.concatenate %192, %167 in 1 : vector<8x32xf32>, vector<8x32xf32> -> vector<8x64xf32>
    %c0_68 = arith.constant 0 : index
    %c0_69 = arith.constant 0 : index
    %c0_70 = arith.constant 0 : index
    %194 = vector.load %arg5[%c0_68, %c0_69, %c0_70] : memref<1x64x128xf32, #tpu.memory_space<vmem>>, vector<1x64x128xf32>
    %195 = vector.shape_cast %194 : vector<1x64x128xf32> to vector<64x128xf32>
    %cst_71 = arith.constant dense<0.000000e+00> : vector<8x128xf32>
    %196 = tpu.matmul %193, %195, %cst_71 {dimension_numbers = #tpu.dot_dimension_numbers<[1], [0], [0], [1], [0, 0, 1, 1], [], []>} : vector<8x64xf32>, vector<64x128xf32>, vector<8x128xf32> -> vector<8x128xf32>
    %c1_72 = arith.constant 1 : index
    %c0_73 = arith.constant 0 : index
    %c0_74 = arith.constant 0 : index
    %197 = vector.load %arg6[%c1_72, %c0_73, %c0_74] : memref<2x1x128xf32, #tpu.memory_space<vmem>>, vector<1x1x128xf32>
    %198 = vector.shape_cast %197 : vector<1x1x128xf32> to vector<1x128xf32>
    %199 = vector.broadcast %198 : vector<1x128xf32> to vector<8x128xf32>
    %200 = arith.addf %196, %199 : vector<8x128xf32>
    %201 = math.tanh %200 : vector<8x128xf32>
    %202 = arith.negf %200 : vector<8x128xf32>
    %203 = math.exp %202 : vector<8x128xf32>
    %cst_75 = arith.constant 1.000000e+00 : f32
    %204 = vector.broadcast %cst_75 : f32 to vector<8x128xf32>
    %205 = arith.addf %204, %203 : vector<8x128xf32>
    %206 = arith.divf %204, %205 : vector<8x128xf32>
    %207 = arith.select %12, %201, %206 : vector<8x128xi1>, vector<8x128xf32>
    %208 = vector.extract_strided_slice %207 {offsets = [0, 0], sizes = [8, 32], strides = [1, 1]} : vector<8x128xf32> to vector<8x32xf32>
    %209 = vector.extract_strided_slice %207 {offsets = [0, 32], sizes = [8, 32], strides = [1, 1]} : vector<8x128xf32> to vector<8x32xf32>
    %210 = vector.extract_strided_slice %207 {offsets = [0, 64], sizes = [8, 32], strides = [1, 1]} : vector<8x128xf32> to vector<8x32xf32>
    %211 = vector.extract_strided_slice %207 {offsets = [0, 96], sizes = [8, 32], strides = [1, 1]} : vector<8x128xf32> to vector<8x32xf32>
    %212 = arith.mulf %209, %165 : vector<8x32xf32>
    %213 = arith.mulf %208, %210 : vector<8x32xf32>
    %214 = arith.addf %212, %213 : vector<8x32xf32>
    %215 = math.tanh %214 : vector<8x32xf32>
    %216 = arith.mulf %211, %215 : vector<8x32xf32>
    %217 = vector.extract_strided_slice %6 {offsets = [4, 0, 0], sizes = [1, 8, 128], strides = [1, 1, 1]} : vector<8x8x128xf32> to vector<1x8x128xf32>
    %218 = vector.shape_cast %217 : vector<1x8x128xf32> to vector<8x128xf32>
    %c0_76 = arith.constant 0 : index
    %c0_77 = arith.constant 0 : index
    %219 = vector.load %arg4[%c0_76, %c0_77] : memref<32x128xf32, #tpu.memory_space<vmem>>, vector<32x128xf32>
    %cst_78 = arith.constant dense<0.000000e+00> : vector<8x128xf32>
    %220 = tpu.matmul %192, %219, %cst_78 {dimension_numbers = #tpu.dot_dimension_numbers<[1], [0], [0], [1], [0, 0, 1, 1], [], []>} : vector<8x32xf32>, vector<32x128xf32>, vector<8x128xf32> -> vector<8x128xf32>
    %221 = arith.addf %218, %220 : vector<8x128xf32>
    %c0_79 = arith.constant 0 : index
    %c0_80 = arith.constant 0 : index
    %c0_81 = arith.constant 0 : index
    %222 = vector.load %arg6[%c0_79, %c0_80, %c0_81] : memref<2x1x128xf32, #tpu.memory_space<vmem>>, vector<1x1x128xf32>
    %223 = vector.shape_cast %222 : vector<1x1x128xf32> to vector<1x128xf32>
    %224 = vector.broadcast %223 : vector<1x128xf32> to vector<8x128xf32>
    %225 = arith.addf %221, %224 : vector<8x128xf32>
    %226 = math.tanh %225 : vector<8x128xf32>
    %227 = arith.negf %225 : vector<8x128xf32>
    %228 = math.exp %227 : vector<8x128xf32>
    %cst_82 = arith.constant 1.000000e+00 : f32
    %229 = vector.broadcast %cst_82 : f32 to vector<8x128xf32>
    %230 = arith.addf %229, %228 : vector<8x128xf32>
    %231 = arith.divf %229, %230 : vector<8x128xf32>
    %232 = arith.select %12, %226, %231 : vector<8x128xi1>, vector<8x128xf32>
    %233 = vector.extract_strided_slice %232 {offsets = [0, 0], sizes = [8, 32], strides = [1, 1]} : vector<8x128xf32> to vector<8x32xf32>
    %234 = vector.extract_strided_slice %232 {offsets = [0, 32], sizes = [8, 32], strides = [1, 1]} : vector<8x128xf32> to vector<8x32xf32>
    %235 = vector.extract_strided_slice %232 {offsets = [0, 64], sizes = [8, 32], strides = [1, 1]} : vector<8x128xf32> to vector<8x32xf32>
    %236 = vector.extract_strided_slice %232 {offsets = [0, 96], sizes = [8, 32], strides = [1, 1]} : vector<8x128xf32> to vector<8x32xf32>
    %237 = arith.mulf %234, %190 : vector<8x32xf32>
    %238 = arith.mulf %233, %235 : vector<8x32xf32>
    %239 = arith.addf %237, %238 : vector<8x32xf32>
    %240 = math.tanh %239 : vector<8x32xf32>
    %241 = arith.mulf %236, %240 : vector<8x32xf32>
    %242 = tpu.concatenate %241, %216 in 1 : vector<8x32xf32>, vector<8x32xf32> -> vector<8x64xf32>
    %c0_83 = arith.constant 0 : index
    %c0_84 = arith.constant 0 : index
    %c0_85 = arith.constant 0 : index
    %243 = vector.load %arg5[%c0_83, %c0_84, %c0_85] : memref<1x64x128xf32, #tpu.memory_space<vmem>>, vector<1x64x128xf32>
    %244 = vector.shape_cast %243 : vector<1x64x128xf32> to vector<64x128xf32>
    %cst_86 = arith.constant dense<0.000000e+00> : vector<8x128xf32>
    %245 = tpu.matmul %242, %244, %cst_86 {dimension_numbers = #tpu.dot_dimension_numbers<[1], [0], [0], [1], [0, 0, 1, 1], [], []>} : vector<8x64xf32>, vector<64x128xf32>, vector<8x128xf32> -> vector<8x128xf32>
    %c1_87 = arith.constant 1 : index
    %c0_88 = arith.constant 0 : index
    %c0_89 = arith.constant 0 : index
    %246 = vector.load %arg6[%c1_87, %c0_88, %c0_89] : memref<2x1x128xf32, #tpu.memory_space<vmem>>, vector<1x1x128xf32>
    %247 = vector.shape_cast %246 : vector<1x1x128xf32> to vector<1x128xf32>
    %248 = vector.broadcast %247 : vector<1x128xf32> to vector<8x128xf32>
    %249 = arith.addf %245, %248 : vector<8x128xf32>
    %250 = math.tanh %249 : vector<8x128xf32>
    %251 = arith.negf %249 : vector<8x128xf32>
    %252 = math.exp %251 : vector<8x128xf32>
    %cst_90 = arith.constant 1.000000e+00 : f32
    %253 = vector.broadcast %cst_90 : f32 to vector<8x128xf32>
    %254 = arith.addf %253, %252 : vector<8x128xf32>
    %255 = arith.divf %253, %254 : vector<8x128xf32>
    %256 = arith.select %12, %250, %255 : vector<8x128xi1>, vector<8x128xf32>
    %257 = vector.extract_strided_slice %256 {offsets = [0, 0], sizes = [8, 32], strides = [1, 1]} : vector<8x128xf32> to vector<8x32xf32>
    %258 = vector.extract_strided_slice %256 {offsets = [0, 32], sizes = [8, 32], strides = [1, 1]} : vector<8x128xf32> to vector<8x32xf32>
    %259 = vector.extract_strided_slice %256 {offsets = [0, 64], sizes = [8, 32], strides = [1, 1]} : vector<8x128xf32> to vector<8x32xf32>
    %260 = vector.extract_strided_slice %256 {offsets = [0, 96], sizes = [8, 32], strides = [1, 1]} : vector<8x128xf32> to vector<8x32xf32>
    %261 = arith.mulf %258, %214 : vector<8x32xf32>
    %262 = arith.mulf %257, %259 : vector<8x32xf32>
    %263 = arith.addf %261, %262 : vector<8x32xf32>
    %264 = math.tanh %263 : vector<8x32xf32>
    %265 = arith.mulf %260, %264 : vector<8x32xf32>
    %266 = vector.extract_strided_slice %6 {offsets = [5, 0, 0], sizes = [1, 8, 128], strides = [1, 1, 1]} : vector<8x8x128xf32> to vector<1x8x128xf32>
    %267 = vector.shape_cast %266 : vector<1x8x128xf32> to vector<8x128xf32>
    %c0_91 = arith.constant 0 : index
    %c0_92 = arith.constant 0 : index
    %268 = vector.load %arg4[%c0_91, %c0_92] : memref<32x128xf32, #tpu.memory_space<vmem>>, vector<32x128xf32>
    %cst_93 = arith.constant dense<0.000000e+00> : vector<8x128xf32>
    %269 = tpu.matmul %241, %268, %cst_93 {dimension_numbers = #tpu.dot_dimension_numbers<[1], [0], [0], [1], [0, 0, 1, 1], [], []>} : vector<8x32xf32>, vector<32x128xf32>, vector<8x128xf32> -> vector<8x128xf32>
    %270 = arith.addf %267, %269 : vector<8x128xf32>
    %c0_94 = arith.constant 0 : index
    %c0_95 = arith.constant 0 : index
    %c0_96 = arith.constant 0 : index
    %271 = vector.load %arg6[%c0_94, %c0_95, %c0_96] : memref<2x1x128xf32, #tpu.memory_space<vmem>>, vector<1x1x128xf32>
    %272 = vector.shape_cast %271 : vector<1x1x128xf32> to vector<1x128xf32>
    %273 = vector.broadcast %272 : vector<1x128xf32> to vector<8x128xf32>
    %274 = arith.addf %270, %273 : vector<8x128xf32>
    %275 = math.tanh %274 : vector<8x128xf32>
    %276 = arith.negf %274 : vector<8x128xf32>
    %277 = math.exp %276 : vector<8x128xf32>
    %cst_97 = arith.constant 1.000000e+00 : f32
    %278 = vector.broadcast %cst_97 : f32 to vector<8x128xf32>
    %279 = arith.addf %278, %277 : vector<8x128xf32>
    %280 = arith.divf %278, %279 : vector<8x128xf32>
    %281 = arith.select %12, %275, %280 : vector<8x128xi1>, vector<8x128xf32>
    %282 = vector.extract_strided_slice %281 {offsets = [0, 0], sizes = [8, 32], strides = [1, 1]} : vector<8x128xf32> to vector<8x32xf32>
    %283 = vector.extract_strided_slice %281 {offsets = [0, 32], sizes = [8, 32], strides = [1, 1]} : vector<8x128xf32> to vector<8x32xf32>
    %284 = vector.extract_strided_slice %281 {offsets = [0, 64], sizes = [8, 32], strides = [1, 1]} : vector<8x128xf32> to vector<8x32xf32>
    %285 = vector.extract_strided_slice %281 {offsets = [0, 96], sizes = [8, 32], strides = [1, 1]} : vector<8x128xf32> to vector<8x32xf32>
    %286 = arith.mulf %283, %239 : vector<8x32xf32>
    %287 = arith.mulf %282, %284 : vector<8x32xf32>
    %288 = arith.addf %286, %287 : vector<8x32xf32>
    %289 = math.tanh %288 : vector<8x32xf32>
    %290 = arith.mulf %285, %289 : vector<8x32xf32>
    %291 = tpu.concatenate %290, %265 in 1 : vector<8x32xf32>, vector<8x32xf32> -> vector<8x64xf32>
    %c0_98 = arith.constant 0 : index
    %c0_99 = arith.constant 0 : index
    %c0_100 = arith.constant 0 : index
    %292 = vector.load %arg5[%c0_98, %c0_99, %c0_100] : memref<1x64x128xf32, #tpu.memory_space<vmem>>, vector<1x64x128xf32>
    %293 = vector.shape_cast %292 : vector<1x64x128xf32> to vector<64x128xf32>
    %cst_101 = arith.constant dense<0.000000e+00> : vector<8x128xf32>
    %294 = tpu.matmul %291, %293, %cst_101 {dimension_numbers = #tpu.dot_dimension_numbers<[1], [0], [0], [1], [0, 0, 1, 1], [], []>} : vector<8x64xf32>, vector<64x128xf32>, vector<8x128xf32> -> vector<8x128xf32>
    %c1_102 = arith.constant 1 : index
    %c0_103 = arith.constant 0 : index
    %c0_104 = arith.constant 0 : index
    %295 = vector.load %arg6[%c1_102, %c0_103, %c0_104] : memref<2x1x128xf32, #tpu.memory_space<vmem>>, vector<1x1x128xf32>
    %296 = vector.shape_cast %295 : vector<1x1x128xf32> to vector<1x128xf32>
    %297 = vector.broadcast %296 : vector<1x128xf32> to vector<8x128xf32>
    %298 = arith.addf %294, %297 : vector<8x128xf32>
    %299 = math.tanh %298 : vector<8x128xf32>
    %300 = arith.negf %298 : vector<8x128xf32>
    %301 = math.exp %300 : vector<8x128xf32>
    %cst_105 = arith.constant 1.000000e+00 : f32
    %302 = vector.broadcast %cst_105 : f32 to vector<8x128xf32>
    %303 = arith.addf %302, %301 : vector<8x128xf32>
    %304 = arith.divf %302, %303 : vector<8x128xf32>
    %305 = arith.select %12, %299, %304 : vector<8x128xi1>, vector<8x128xf32>
    %306 = vector.extract_strided_slice %305 {offsets = [0, 0], sizes = [8, 32], strides = [1, 1]} : vector<8x128xf32> to vector<8x32xf32>
    %307 = vector.extract_strided_slice %305 {offsets = [0, 32], sizes = [8, 32], strides = [1, 1]} : vector<8x128xf32> to vector<8x32xf32>
    %308 = vector.extract_strided_slice %305 {offsets = [0, 64], sizes = [8, 32], strides = [1, 1]} : vector<8x128xf32> to vector<8x32xf32>
    %309 = vector.extract_strided_slice %305 {offsets = [0, 96], sizes = [8, 32], strides = [1, 1]} : vector<8x128xf32> to vector<8x32xf32>
    %310 = arith.mulf %307, %263 : vector<8x32xf32>
    %311 = arith.mulf %306, %308 : vector<8x32xf32>
    %312 = arith.addf %310, %311 : vector<8x32xf32>
    %313 = math.tanh %312 : vector<8x32xf32>
    %314 = arith.mulf %309, %313 : vector<8x32xf32>
    %315 = vector.extract_strided_slice %6 {offsets = [6, 0, 0], sizes = [1, 8, 128], strides = [1, 1, 1]} : vector<8x8x128xf32> to vector<1x8x128xf32>
    %316 = vector.shape_cast %315 : vector<1x8x128xf32> to vector<8x128xf32>
    %c0_106 = arith.constant 0 : index
    %c0_107 = arith.constant 0 : index
    %317 = vector.load %arg4[%c0_106, %c0_107] : memref<32x128xf32, #tpu.memory_space<vmem>>, vector<32x128xf32>
    %cst_108 = arith.constant dense<0.000000e+00> : vector<8x128xf32>
    %318 = tpu.matmul %290, %317, %cst_108 {dimension_numbers = #tpu.dot_dimension_numbers<[1], [0], [0], [1], [0, 0, 1, 1], [], []>} : vector<8x32xf32>, vector<32x128xf32>, vector<8x128xf32> -> vector<8x128xf32>
    %319 = arith.addf %316, %318 : vector<8x128xf32>
    %c0_109 = arith.constant 0 : index
    %c0_110 = arith.constant 0 : index
    %c0_111 = arith.constant 0 : index
    %320 = vector.load %arg6[%c0_109, %c0_110, %c0_111] : memref<2x1x128xf32, #tpu.memory_space<vmem>>, vector<1x1x128xf32>
    %321 = vector.shape_cast %320 : vector<1x1x128xf32> to vector<1x128xf32>
    %322 = vector.broadcast %321 : vector<1x128xf32> to vector<8x128xf32>
    %323 = arith.addf %319, %322 : vector<8x128xf32>
    %324 = math.tanh %323 : vector<8x128xf32>
    %325 = arith.negf %323 : vector<8x128xf32>
    %326 = math.exp %325 : vector<8x128xf32>
    %cst_112 = arith.constant 1.000000e+00 : f32
    %327 = vector.broadcast %cst_112 : f32 to vector<8x128xf32>
    %328 = arith.addf %327, %326 : vector<8x128xf32>
    %329 = arith.divf %327, %328 : vector<8x128xf32>
    %330 = arith.select %12, %324, %329 : vector<8x128xi1>, vector<8x128xf32>
    %331 = vector.extract_strided_slice %330 {offsets = [0, 0], sizes = [8, 32], strides = [1, 1]} : vector<8x128xf32> to vector<8x32xf32>
    %332 = vector.extract_strided_slice %330 {offsets = [0, 32], sizes = [8, 32], strides = [1, 1]} : vector<8x128xf32> to vector<8x32xf32>
    %333 = vector.extract_strided_slice %330 {offsets = [0, 64], sizes = [8, 32], strides = [1, 1]} : vector<8x128xf32> to vector<8x32xf32>
    %334 = vector.extract_strided_slice %330 {offsets = [0, 96], sizes = [8, 32], strides = [1, 1]} : vector<8x128xf32> to vector<8x32xf32>
    %335 = arith.mulf %332, %288 : vector<8x32xf32>
    %336 = arith.mulf %331, %333 : vector<8x32xf32>
    %337 = arith.addf %335, %336 : vector<8x32xf32>
    %338 = math.tanh %337 : vector<8x32xf32>
    %339 = arith.mulf %334, %338 : vector<8x32xf32>
    %340 = tpu.concatenate %339, %314 in 1 : vector<8x32xf32>, vector<8x32xf32> -> vector<8x64xf32>
    %c0_113 = arith.constant 0 : index
    %c0_114 = arith.constant 0 : index
    %c0_115 = arith.constant 0 : index
    %341 = vector.load %arg5[%c0_113, %c0_114, %c0_115] : memref<1x64x128xf32, #tpu.memory_space<vmem>>, vector<1x64x128xf32>
    %342 = vector.shape_cast %341 : vector<1x64x128xf32> to vector<64x128xf32>
    %cst_116 = arith.constant dense<0.000000e+00> : vector<8x128xf32>
    %343 = tpu.matmul %340, %342, %cst_116 {dimension_numbers = #tpu.dot_dimension_numbers<[1], [0], [0], [1], [0, 0, 1, 1], [], []>} : vector<8x64xf32>, vector<64x128xf32>, vector<8x128xf32> -> vector<8x128xf32>
    %c1_117 = arith.constant 1 : index
    %c0_118 = arith.constant 0 : index
    %c0_119 = arith.constant 0 : index
    %344 = vector.load %arg6[%c1_117, %c0_118, %c0_119] : memref<2x1x128xf32, #tpu.memory_space<vmem>>, vector<1x1x128xf32>
    %345 = vector.shape_cast %344 : vector<1x1x128xf32> to vector<1x128xf32>
    %346 = vector.broadcast %345 : vector<1x128xf32> to vector<8x128xf32>
    %347 = arith.addf %343, %346 : vector<8x128xf32>
    %348 = math.tanh %347 : vector<8x128xf32>
    %349 = arith.negf %347 : vector<8x128xf32>
    %350 = math.exp %349 : vector<8x128xf32>
    %cst_120 = arith.constant 1.000000e+00 : f32
    %351 = vector.broadcast %cst_120 : f32 to vector<8x128xf32>
    %352 = arith.addf %351, %350 : vector<8x128xf32>
    %353 = arith.divf %351, %352 : vector<8x128xf32>
    %354 = arith.select %12, %348, %353 : vector<8x128xi1>, vector<8x128xf32>
    %355 = vector.extract_strided_slice %354 {offsets = [0, 0], sizes = [8, 32], strides = [1, 1]} : vector<8x128xf32> to vector<8x32xf32>
    %356 = vector.extract_strided_slice %354 {offsets = [0, 32], sizes = [8, 32], strides = [1, 1]} : vector<8x128xf32> to vector<8x32xf32>
    %357 = vector.extract_strided_slice %354 {offsets = [0, 64], sizes = [8, 32], strides = [1, 1]} : vector<8x128xf32> to vector<8x32xf32>
    %358 = vector.extract_strided_slice %354 {offsets = [0, 96], sizes = [8, 32], strides = [1, 1]} : vector<8x128xf32> to vector<8x32xf32>
    %359 = arith.mulf %356, %312 : vector<8x32xf32>
    %360 = arith.mulf %355, %357 : vector<8x32xf32>
    %361 = arith.addf %359, %360 : vector<8x32xf32>
    %362 = math.tanh %361 : vector<8x32xf32>
    %363 = arith.mulf %358, %362 : vector<8x32xf32>
    %364 = vector.extract_strided_slice %6 {offsets = [7, 0, 0], sizes = [1, 8, 128], strides = [1, 1, 1]} : vector<8x8x128xf32> to vector<1x8x128xf32>
    %365 = vector.shape_cast %364 : vector<1x8x128xf32> to vector<8x128xf32>
    %c0_121 = arith.constant 0 : index
    %c0_122 = arith.constant 0 : index
    %366 = vector.load %arg4[%c0_121, %c0_122] : memref<32x128xf32, #tpu.memory_space<vmem>>, vector<32x128xf32>
    %cst_123 = arith.constant dense<0.000000e+00> : vector<8x128xf32>
    %367 = tpu.matmul %339, %366, %cst_123 {dimension_numbers = #tpu.dot_dimension_numbers<[1], [0], [0], [1], [0, 0, 1, 1], [], []>} : vector<8x32xf32>, vector<32x128xf32>, vector<8x128xf32> -> vector<8x128xf32>
    %368 = arith.addf %365, %367 : vector<8x128xf32>
    %c0_124 = arith.constant 0 : index
    %c0_125 = arith.constant 0 : index
    %c0_126 = arith.constant 0 : index
    %369 = vector.load %arg6[%c0_124, %c0_125, %c0_126] : memref<2x1x128xf32, #tpu.memory_space<vmem>>, vector<1x1x128xf32>
    %370 = vector.shape_cast %369 : vector<1x1x128xf32> to vector<1x128xf32>
    %371 = vector.broadcast %370 : vector<1x128xf32> to vector<8x128xf32>
    %372 = arith.addf %368, %371 : vector<8x128xf32>
    %373 = math.tanh %372 : vector<8x128xf32>
    %374 = arith.negf %372 : vector<8x128xf32>
    %375 = math.exp %374 : vector<8x128xf32>
    %cst_127 = arith.constant 1.000000e+00 : f32
    %376 = vector.broadcast %cst_127 : f32 to vector<8x128xf32>
    %377 = arith.addf %376, %375 : vector<8x128xf32>
    %378 = arith.divf %376, %377 : vector<8x128xf32>
    %379 = arith.select %12, %373, %378 : vector<8x128xi1>, vector<8x128xf32>
    %380 = vector.extract_strided_slice %379 {offsets = [0, 0], sizes = [8, 32], strides = [1, 1]} : vector<8x128xf32> to vector<8x32xf32>
    %381 = vector.extract_strided_slice %379 {offsets = [0, 32], sizes = [8, 32], strides = [1, 1]} : vector<8x128xf32> to vector<8x32xf32>
    %382 = vector.extract_strided_slice %379 {offsets = [0, 64], sizes = [8, 32], strides = [1, 1]} : vector<8x128xf32> to vector<8x32xf32>
    %383 = vector.extract_strided_slice %379 {offsets = [0, 96], sizes = [8, 32], strides = [1, 1]} : vector<8x128xf32> to vector<8x32xf32>
    %384 = arith.mulf %381, %337 : vector<8x32xf32>
    %385 = arith.mulf %380, %382 : vector<8x32xf32>
    %386 = arith.addf %384, %385 : vector<8x32xf32>
    %387 = math.tanh %386 : vector<8x32xf32>
    %388 = arith.mulf %383, %387 : vector<8x32xf32>
    %389 = tpu.concatenate %388, %363 in 1 : vector<8x32xf32>, vector<8x32xf32> -> vector<8x64xf32>
    %c0_128 = arith.constant 0 : index
    %c0_129 = arith.constant 0 : index
    %c0_130 = arith.constant 0 : index
    %390 = vector.load %arg5[%c0_128, %c0_129, %c0_130] : memref<1x64x128xf32, #tpu.memory_space<vmem>>, vector<1x64x128xf32>
    %391 = vector.shape_cast %390 : vector<1x64x128xf32> to vector<64x128xf32>
    %cst_131 = arith.constant dense<0.000000e+00> : vector<8x128xf32>
    %392 = tpu.matmul %389, %391, %cst_131 {dimension_numbers = #tpu.dot_dimension_numbers<[1], [0], [0], [1], [0, 0, 1, 1], [], []>} : vector<8x64xf32>, vector<64x128xf32>, vector<8x128xf32> -> vector<8x128xf32>
    %c1_132 = arith.constant 1 : index
    %c0_133 = arith.constant 0 : index
    %c0_134 = arith.constant 0 : index
    %393 = vector.load %arg6[%c1_132, %c0_133, %c0_134] : memref<2x1x128xf32, #tpu.memory_space<vmem>>, vector<1x1x128xf32>
    %394 = vector.shape_cast %393 : vector<1x1x128xf32> to vector<1x128xf32>
    %395 = vector.broadcast %394 : vector<1x128xf32> to vector<8x128xf32>
    %396 = arith.addf %392, %395 : vector<8x128xf32>
    %397 = math.tanh %396 : vector<8x128xf32>
    %398 = arith.negf %396 : vector<8x128xf32>
    %399 = math.exp %398 : vector<8x128xf32>
    %cst_135 = arith.constant 1.000000e+00 : f32
    %400 = vector.broadcast %cst_135 : f32 to vector<8x128xf32>
    %401 = arith.addf %400, %399 : vector<8x128xf32>
    %402 = arith.divf %400, %401 : vector<8x128xf32>
    %403 = arith.select %12, %397, %402 : vector<8x128xi1>, vector<8x128xf32>
    %404 = vector.extract_strided_slice %403 {offsets = [0, 0], sizes = [8, 32], strides = [1, 1]} : vector<8x128xf32> to vector<8x32xf32>
    %405 = vector.extract_strided_slice %403 {offsets = [0, 32], sizes = [8, 32], strides = [1, 1]} : vector<8x128xf32> to vector<8x32xf32>
    %406 = vector.extract_strided_slice %403 {offsets = [0, 64], sizes = [8, 32], strides = [1, 1]} : vector<8x128xf32> to vector<8x32xf32>
    %407 = vector.extract_strided_slice %403 {offsets = [0, 96], sizes = [8, 32], strides = [1, 1]} : vector<8x128xf32> to vector<8x32xf32>
    %408 = arith.mulf %405, %361 : vector<8x32xf32>
    %409 = arith.mulf %404, %406 : vector<8x32xf32>
    %410 = arith.addf %408, %409 : vector<8x32xf32>
    %411 = math.tanh %410 : vector<8x32xf32>
    %412 = arith.mulf %407, %411 : vector<8x32xf32>
    %413 = vector.shape_cast %69 : vector<8x32xf32> to vector<1x8x32xf32>
    %414 = vector.shape_cast %118 : vector<8x32xf32> to vector<1x8x32xf32>
    %415 = vector.shape_cast %167 : vector<8x32xf32> to vector<1x8x32xf32>
    %416 = vector.shape_cast %216 : vector<8x32xf32> to vector<1x8x32xf32>
    %417 = vector.shape_cast %265 : vector<8x32xf32> to vector<1x8x32xf32>
    %418 = vector.shape_cast %314 : vector<8x32xf32> to vector<1x8x32xf32>
    %419 = vector.shape_cast %363 : vector<8x32xf32> to vector<1x8x32xf32>
    %420 = vector.shape_cast %412 : vector<8x32xf32> to vector<1x8x32xf32>
    %421 = tpu.concatenate %413, %414, %415, %416, %417, %418, %419, %420 in 0 : vector<1x8x32xf32>, vector<1x8x32xf32>, vector<1x8x32xf32>, vector<1x8x32xf32>, vector<1x8x32xf32>, vector<1x8x32xf32>, vector<1x8x32xf32>, vector<1x8x32xf32> -> vector<8x8x32xf32>
    %422 = vector.shape_cast %421 : vector<8x8x32xf32> to vector<64x32xf32>
    %c0_136 = arith.constant 0 : index
    %c0_137 = arith.constant 0 : index
    %423 = vector.load %arg7[%c0_136, %c0_137] : memref<32x50xf32, #tpu.memory_space<vmem>>, vector<32x50xf32>
    %cst_138 = arith.constant dense<0.000000e+00> : vector<64x50xf32>
    %424 = tpu.matmul %422, %423, %cst_138 {dimension_numbers = #tpu.dot_dimension_numbers<[1], [0], [0], [1], [0, 0, 1, 1], [], []>} : vector<64x32xf32>, vector<32x50xf32>, vector<64x50xf32> -> vector<64x50xf32>
    %c0_139 = arith.constant 0 : index
    %c0_140 = arith.constant 0 : index
    %425 = vector.load %arg8[%c0_139, %c0_140] : memref<1x50xf32, #tpu.memory_space<vmem>>, vector<1x50xf32>
    %426 = vector.broadcast %425 : vector<1x50xf32> to vector<64x50xf32>
    %427 = arith.addf %424, %426 : vector<64x50xf32>
    %428 = vector.shape_cast %427 : vector<64x50xf32> to vector<8x8x50xf32>
    %c0_141 = arith.constant 0 : index
    %c0_142 = arith.constant 0 : index
    %c0_143 = arith.constant 0 : index
    %429 = vector.load %arg9[%c0_141, %c0_142, %c0_143] : memref<8x8x50xf32, #tpu.memory_space<vmem>>, vector<8x8x50xf32>
    tpu.vector_store %arg9[%c0_141, %c0_142, %c0_143], %428 {strides = array<i32>} : memref<8x8x50xf32, #tpu.memory_space<vmem>>, vector<8x8x50xf32>,
    %430 = vector.shape_cast %388 : vector<8x32xf32> to vector<1x8x32xf32>
    %431 = vector.shape_cast %412 : vector<8x32xf32> to vector<1x8x32xf32>
    %432 = tpu.concatenate %430, %431 in 0 : vector<1x8x32xf32>, vector<1x8x32xf32> -> vector<2x8x32xf32>
    %c0_144 = arith.constant 0 : index
    %c0_145 = arith.constant 0 : index
    %c0_146 = arith.constant 0 : index
    %433 = vector.load %arg10[%c0_144, %c0_145, %c0_146] : memref<2x8x32xf32, #tpu.memory_space<vmem>>, vector<2x8x32xf32>
    tpu.vector_store %arg10[%c0_144, %c0_145, %c0_146], %432 {strides = array<i32>} : memref<2x8x32xf32, #tpu.memory_space<vmem>>, vector<2x8x32xf32>,
    %434 = vector.shape_cast %386 : vector<8x32xf32> to vector<1x8x32xf32>
    %435 = vector.shape_cast %410 : vector<8x32xf32> to vector<1x8x32xf32>
    %436 = tpu.concatenate %434, %435 in 0 : vector<1x8x32xf32>, vector<1x8x32xf32> -> vector<2x8x32xf32>
    %c0_147 = arith.constant 0 : index
    %c0_148 = arith.constant 0 : index
    %c0_149 = arith.constant 0 : index
    %437 = vector.load %arg11[%c0_147, %c0_148, %c0_149] : memref<2x8x32xf32, #tpu.memory_space<vmem>>, vector<2x8x32xf32>
    tpu.vector_store %arg11[%c0_147, %c0_148, %c0_149], %436 {strides = array<i32>} : memref<2x8x32xf32, #tpu.memory_space<vmem>>, vector<2x8x32xf32>,
    return
  }
}

</mosaic_0001>

<llo_original>
// kernel: decoder_lstm_forward.1
$region0: #{decoder_lstm_forward.1}
  #allocation0 [shape = 'u32[]', space=smem, size = 0x4, offset = 0x4, fixed_abs, tag = 'smem constant byte address 0x4 - core index']
  #allocation1 [shape = 'u32[72,128]{1,0:T(1,128)}', space=vmem, size = 0x9000, scoped, tag = 'internal scratch']
  %s0 = inlined_call_operand.vmem [shape: f32[8,8,32], index: 0, kind: input, shape index: {}]
  %s1 = inlined_call_operand.vmem [shape: f32[2,8,32], index: 1, kind: input, shape index: {}]
  %s2 = inlined_call_operand.vmem [shape: f32[2,8,32], index: 2, kind: input, shape index: {}]
  %s3 = inlined_call_operand.vmem [shape: f32[32,128], index: 3, kind: input, shape index: {}]
  %s4 = inlined_call_operand.vmem [shape: f32[32,128], index: 4, kind: input, shape index: {}]
  %s5 = inlined_call_operand.vmem [shape: f32[1,64,128], index: 5, kind: input, shape index: {}]
  %s6 = inlined_call_operand.vmem [shape: f32[2,1,128], index: 6, kind: input, shape index: {}]
  %s7 = inlined_call_operand.vmem [shape: f32[32,50], index: 7, kind: input, shape index: {}]
  %s8 = inlined_call_operand.vmem [shape: f32[1,50], index: 8, kind: input, shape index: {}]
  %s9 = inlined_call_operand.vmem [shape: f32[8,8,50], index: 9, kind: output, shape index: {0}]
  %s10 = inlined_call_operand.vmem [shape: f32[2,8,32], index: 10, kind: output, shape index: {1}]
  %s11 = inlined_call_operand.vmem [shape: f32[2,8,32], index: 11, kind: output, shape index: {2}]
  %12 = xla_tuple %s9, %s10, %s11
  %s13 = sld [smem:[#allocation0]]
  $region62: #{decoder_lstm_forward.1} parent=0
    _
  %s15 = ssub.s32 1, %s13
  %s16 = scalar_select 0, %s15, %s13
  // Predicated region
  $region2: #{decoder_lstm_forward.1} parent=0 // pred_check
    _
  $region3: #{decoder_lstm_forward.1} parent=0 // pred_check_branch
    %18 = sbr.rel (0) target = $region5
  $region4: #{decoder_lstm_forward.1} parent=0 // pred_region
    _
  $region5: #{decoder_lstm_forward.1} parent=0 // pred_fallthru
    _
  // Predicated region
  $region6: #{decoder_lstm_forward.1} parent=0 // pred_check
    _
  $region7: #{decoder_lstm_forward.1} parent=0 // pred_check_branch
    %20 = sbr.rel (0) target = $region9
  $region8: #{decoder_lstm_forward.1} parent=0 // pred_region
    _
  $region9: #{decoder_lstm_forward.1} parent=0 // pred_fallthru
    _
  // Predicated region
  $region10: #{decoder_lstm_forward.1} parent=0 // pred_check
    _
  $region11: #{decoder_lstm_forward.1} parent=0 // pred_check_branch
    %22 = sbr.rel (0) target = $region13
  $region12: #{decoder_lstm_forward.1} parent=0 // pred_region
    _
  $region13: #{decoder_lstm_forward.1} parent=0 // pred_fallthru
    _
  // Predicated region
  $region14: #{decoder_lstm_forward.1} parent=0 // pred_check
    _
  $region15: #{decoder_lstm_forward.1} parent=0 // pred_check_branch
    %24 = sbr.rel (0) target = $region17
  $region16: #{decoder_lstm_forward.1} parent=0 // pred_region
    _
  $region17: #{decoder_lstm_forward.1} parent=0 // pred_fallthru
    _
  // Predicated region
  $region18: #{decoder_lstm_forward.1} parent=0 // pred_check
    _
  $region19: #{decoder_lstm_forward.1} parent=0 // pred_check_branch
    %26 = sbr.rel (0) target = $region21
  $region20: #{decoder_lstm_forward.1} parent=0 // pred_region
    _
  $region21: #{decoder_lstm_forward.1} parent=0 // pred_fallthru
    _
  // Predicated region
  $region22: #{decoder_lstm_forward.1} parent=0 // pred_check
    _
  $region23: #{decoder_lstm_forward.1} parent=0 // pred_check_branch
    %28 = sbr.rel (0) target = $region25
  $region24: #{decoder_lstm_forward.1} parent=0 // pred_region
    _
  $region25: #{decoder_lstm_forward.1} parent=0 // pred_fallthru
    _
  // Predicated region
  $region26: #{decoder_lstm_forward.1} parent=0 // pred_check
    _
  $region27: #{decoder_lstm_forward.1} parent=0 // pred_check_branch
    %30 = sbr.rel (0) target = $region29
  $region28: #{decoder_lstm_forward.1} parent=0 // pred_region
    _
  $region29: #{decoder_lstm_forward.1} parent=0 // pred_fallthru
    _
  // Predicated region
  $region30: #{decoder_lstm_forward.1} parent=0 // pred_check
    _
  $region31: #{decoder_lstm_forward.1} parent=0 // pred_check_branch
    %32 = sbr.rel (0) target = $region33
  $region32: #{decoder_lstm_forward.1} parent=0 // pred_region
    _
  $region33: #{decoder_lstm_forward.1} parent=0 // pred_fallthru
    _
  // Predicated region
  $region34: #{decoder_lstm_forward.1} parent=0 // pred_check
    _
  $region35: #{decoder_lstm_forward.1} parent=0 // pred_check_branch
    %34 = sbr.rel (0) target = $region37
  $region36: #{decoder_lstm_forward.1} parent=0 // pred_region
    _
  $region37: #{decoder_lstm_forward.1} parent=0 // pred_fallthru
    _
  %v35 = vld [vmem:[%s0] sm:$0xff]
  %v36 = vld [vmem:[%s0 + $0x8] sm:$0xff]
  %v37 = vld [vmem:[%s0 + $0x10] sm:$0xff]
  %v38 = vld [vmem:[%s0 + $0x18] sm:$0xff]
  %v39 = vld [vmem:[%s0 + $0x20] sm:$0xff]
  %v40 = vld [vmem:[%s0 + $0x28] sm:$0xff]
  %v41 = vld [vmem:[%s0 + $0x30] sm:$0xff]
  %v42 = vld [vmem:[%s0 + $0x38] sm:$0xff]
  %v43 = vmax.f32 %v35, 0.0
  %v44 = vmax.f32 %v36, 0.0
  %v45 = vmax.f32 %v37, 0.0
  %v46 = vmax.f32 %v38, 0.0
  %v47 = vmax.f32 %v39, 0.0
  %v48 = vmax.f32 %v40, 0.0
  %v49 = vmax.f32 %v41, 0.0
  %v50 = vmax.f32 %v42, 0.0
  %v51 = vld [vmem:[%s3] sm:$0xff]
  %v52 = vld [vmem:[%s3 + $0x8] sm:$0xff]
  %v53 = vld [vmem:[%s3 + $0x10] sm:$0xff]
  %v54 = vld [vmem:[%s3 + $0x18] sm:$0xff]
  %vm55 = vcmask 261120
  %v57 = vsel %vm55, %v43, 0
  %v60 = vsel %vm55, %v44, 0
  %v63 = vsel %vm55, %v45, 0
  %v66 = vsel %vm55, %v46, 0
  %v69 = vsel %vm55, %v47, 0
  %v72 = vsel %vm55, %v48, 0
  %v75 = vsel %vm55, %v49, 0
  %v78 = vsel %vm55, %v50, 0
  %80 = vmatpush.msra.mxu0 0.0
  %81 = vmatpush.msra.mxu0 0.0
  %82 = vmatpush.msra.mxu0 0.0
  %83 = vmatpush.msra.mxu0 0.0
  %84 = vmatpush.msra.mxu0 0.0
  %85 = vmatpush.msra.mxu0 0.0
  %86 = vmatpush.msra.mxu0 0.0
  %87 = vmatpush.msra.mxu0 0.0
  %88 = vmatpush.msra.mxu0 0.0
  %89 = vmatpush.msra.mxu0 0.0
  %90 = vmatpush.msra.mxu0 0.0
  %91 = vmatpush.msra.mxu0 0.0
  %92 = vmatpush.msra.mxu0 %v54
  %93 = vmatpush.msra.mxu0 %v53
  %94 = vmatpush.msra.mxu0 %v52
  %95 = vmatpush.msra.mxu0 %v51
  %96 = vmatmul.f32.gmra.mxu0 %v57
  %v97 = vpop.f32.mrf.mxu0
  %v98 = vadd.f32 0.0, %v97
  %99 = vmatmul.f32.gmra.mxu0 %v60
  %v100 = vpop.f32.mrf.mxu0
  %v101 = vadd.f32 0.0, %v100
  %102 = vmatmul.f32.gmra.mxu0 %v63
  %v103 = vpop.f32.mrf.mxu0
  %v104 = vadd.f32 0.0, %v103
  %105 = vmatmul.f32.gmra.mxu0 %v66
  %v106 = vpop.f32.mrf.mxu0
  %v107 = vadd.f32 0.0, %v106
  %108 = vmatmul.f32.gmra.mxu0 %v69
  %v109 = vpop.f32.mrf.mxu0
  %v110 = vadd.f32 0.0, %v109
  %111 = vmatmul.f32.gmra.mxu0 %v72
  %v112 = vpop.f32.mrf.mxu0
  %v113 = vadd.f32 0.0, %v112
  %114 = vmatmul.f32.gmra.mxu0 %v75
  %v115 = vpop.f32.mrf.mxu0
  %v116 = vadd.f32 0.0, %v115
  %117 = vmatmul.f32.gmra.mxu0 %v78
  %v118 = vpop.f32.mrf.mxu0
  %v119 = vadd.f32 0.0, %v118
  %120 = vdwg.mxu0
  %v121 = vlaneseq
  %v122 = vand.u32 %v121, 127
  %vm123 = vcmp.ge.s32.totalorder %v122, 64
  %vm124 = vcmp.lt.s32.totalorder %v122, 96
  %vm125 = vmand %vm123, %vm124
  %v126 = vld [vmem:[%s1] sm:$0xff]
  %s127 = scalar_lea.vmem %s1, 8
  %v128 = vld [vmem:[%s127] sm:$0xff]
  %v129 = vld [vmem:[%s2] sm:$0xff]
  %s130 = scalar_lea.vmem %s2, 8
  %v131 = vld [vmem:[%s130] sm:$0xff]
  %v132 = vld [vmem:[%s4] sm:$0xff]
  %v133 = vld [vmem:[%s4 + $0x8] sm:$0xff]
  %v134 = vld [vmem:[%s4 + $0x10] sm:$0xff]
  %v135 = vld [vmem:[%s4 + $0x18] sm:$0xff]
  %v137 = vsel %vm55, %v126, 0
  %139 = vmatpush.msra.mxu0 0.0
  %140 = vmatpush.msra.mxu0 0.0
  %141 = vmatpush.msra.mxu0 0.0
  %142 = vmatpush.msra.mxu0 0.0
  %143 = vmatpush.msra.mxu0 0.0
  %144 = vmatpush.msra.mxu0 0.0
  %145 = vmatpush.msra.mxu0 0.0
  %146 = vmatpush.msra.mxu0 0.0
  %147 = vmatpush.msra.mxu0 0.0
  %148 = vmatpush.msra.mxu0 0.0
  %149 = vmatpush.msra.mxu0 0.0
  %150 = vmatpush.msra.mxu0 0.0
  %151 = vmatpush.msra.mxu0 %v135
  %152 = vmatpush.msra.mxu0 %v134
  %153 = vmatpush.msra.mxu0 %v133
  %154 = vmatpush.msra.mxu0 %v132
  %155 = vmatmul.f32.gmra.mxu0 %v137
  %v156 = vpop.f32.mrf.mxu0
  %v157 = vadd.f32 0.0, %v156
  %158 = vdwg.mxu0
  %v159 = vadd.f32 %v98, %v157
  %v160 = vld [vmem:[%s6] sm:$0x1]
  %v162 = vperm.slane %v160, 0
  %v164 = vadd.f32 %v159, %v162
  %v165 = vtanh.pop %v164
  %v166 = vxor.u32 %v164, 2147483648
  %v167 = vmul.f32 %v166, 1.442695
  %v168 = vpow.pop %v167
  %v169 = vadd.f32 %v168, 1.0
  %v170 = vrcp.pop %v169
  %v171 = vmul.f32 %v169, %v170
  %v172 = vsub.f32 1.0, %v171
  %v173 = vmul.f32 %v170, %v172
  %v174 = vadd.f32 %v170, %v173
  %vm175 = vweird.f32 %v169
  %vm176 = vweird.f32 %v170
  %vm177 = vmor %vm175, %vm176
  %v178 = vsel %vm177, %v170, %v174
  %v179 = vand.u32 2147483647, %v169
  %vm180 = vcmp.eq.f32.partialorder %v179, 8.507059e+37
  %v181 = vand.u32 %v169, 2147483648
  %v182 = vor.u32 1.1754944e-38, %v181
  %v183 = vsel %vm180, %v182, %v178
  %v184 = vmul.f32 1.0, %v183
  %v185 = vsel %vm125, %v165, %v184
  %187 = vrot.lane.b32.xlu0 %v129, 32
  %v188 = vpop.permute.xlu0 %187
  %v190 = vmul.f32 %v185, %v188
  %192 = vrot.lane.b32.xlu0 %v185, 64
  %v193 = vpop.permute.xlu0 %192
  %v195 = vmul.f32 %v185, %v193
  %197 = vrot.lane.b32.xlu0 %v195, 32
  %v198 = vpop.permute.xlu0 %197
  %v200 = vadd.f32 %v190, %v198
  %v201 = vtanh.pop %v200
  %203 = vrot.lane.b32.xlu0 %v201, 64
  %v204 = vpop.permute.xlu0 %203
  %v206 = vmul.f32 %v185, %v204
  %208 = vrot.lane.b32.xlu0 %v206, 32
  %v209 = vpop.permute.xlu0 %208
  %212 = vrot.lane.b32.xlu0 %v128, 32
  %v213 = vpop.permute.xlu0 %212
  %v215 = vsel %vm55, %v209, %v213
  %v216 = vld [vmem:[%s5] sm:$0xff]
  %v217 = vld [vmem:[%s5 + $0x8] sm:$0xff]
  %v218 = vld [vmem:[%s5 + $0x10] sm:$0xff]
  %v219 = vld [vmem:[%s5 + $0x18] sm:$0xff]
  %v220 = vld [vmem:[%s5 + $0x20] sm:$0xff]
  %v221 = vld [vmem:[%s5 + $0x28] sm:$0xff]
  %v222 = vld [vmem:[%s5 + $0x30] sm:$0xff]
  %v223 = vld [vmem:[%s5 + $0x38] sm:$0xff]
  %s224 = scalar_lea.vmem %s6, 1
  %v225 = vld [vmem:[%s224] sm:$0x1]
  %v227 = vperm.slane %v225, 0
  %vm229 = vcmask 523264
  %v231 = vsel %vm229, %v215, 0
  %233 = vmatpush.msra.mxu0 0.0
  %234 = vmatpush.msra.mxu0 0.0
  %235 = vmatpush.msra.mxu0 0.0
  %236 = vmatpush.msra.mxu0 0.0
  %237 = vmatpush.msra.mxu0 0.0
  %238 = vmatpush.msra.mxu0 0.0
  %239 = vmatpush.msra.mxu0 0.0
  %240 = vmatpush.msra.mxu0 0.0
  %241 = vmatpush.msra.mxu0 %v223
  %242 = vmatpush.msra.mxu0 %v222
  %243 = vmatpush.msra.mxu0 %v221
  %244 = vmatpush.msra.mxu0 %v220
  %245 = vmatpush.msra.mxu0 %v219
  %246 = vmatpush.msra.mxu0 %v218
  %247 = vmatpush.msra.mxu0 %v217
  %248 = vmatpush.msra.mxu0 %v216
  %249 = vmatmul.f32.gmra.mxu0 %v231
  %v250 = vpop.f32.mrf.mxu0
  %v251 = vadd.f32 %v227, %v250
  %252 = vdwg.mxu0
  %v253 = vtanh.pop %v251
  %v254 = vxor.u32 %v251, 2147483648
  %v255 = vmul.f32 %v254, 1.442695
  %v256 = vpow.pop %v255
  %v257 = vadd.f32 %v256, 1.0
  %v258 = vrcp.pop %v257
  %v259 = vmul.f32 %v257, %v258
  %v260 = vsub.f32 1.0, %v259
  %v261 = vmul.f32 %v258, %v260
  %v262 = vadd.f32 %v258, %v261
  %vm263 = vweird.f32 %v257
  %vm264 = vweird.f32 %v258
  %vm265 = vmor %vm263, %vm264
  %v266 = vsel %vm265, %v258, %v262
  %v267 = vand.u32 2147483647, %v257
  %vm268 = vcmp.eq.f32.partialorder %v267, 8.507059e+37
  %v269 = vand.u32 %v257, 2147483648
  %v270 = vor.u32 1.1754944e-38, %v269
  %v271 = vsel %vm268, %v270, %v266
  %v272 = vmul.f32 1.0, %v271
  %v273 = vsel %vm125, %v253, %v272
  %275 = vrot.lane.b32.xlu0 %v131, 32
  %v276 = vpop.permute.xlu0 %275
  %v278 = vmul.f32 %v273, %v276
  %280 = vrot.lane.b32.xlu0 %v273, 64
  %v281 = vpop.permute.xlu0 %280
  %v283 = vmul.f32 %v273, %v281
  %285 = vrot.lane.b32.xlu0 %v283, 32
  %v286 = vpop.permute.xlu0 %285
  %v288 = vadd.f32 %v278, %v286
  %v289 = vtanh.pop %v288
  %291 = vrot.lane.b32.xlu0 %v289, 64
  %v292 = vpop.permute.xlu0 %291
  %v294 = vmul.f32 %v273, %v292
  %v295 = vsel %vm55, %v209, 0
  %297 = vmatpush.msra.mxu0 0.0
  %298 = vmatpush.msra.mxu0 0.0
  %299 = vmatpush.msra.mxu0 0.0
  %300 = vmatpush.msra.mxu0 0.0
  %301 = vmatpush.msra.mxu0 0.0
  %302 = vmatpush.msra.mxu0 0.0
  %303 = vmatpush.msra.mxu0 0.0
  %304 = vmatpush.msra.mxu0 0.0
  %305 = vmatpush.msra.mxu0 0.0
  %306 = vmatpush.msra.mxu0 0.0
  %307 = vmatpush.msra.mxu0 0.0
  %308 = vmatpush.msra.mxu0 0.0
  %309 = vmatpush.msra.mxu0 %v135
  %310 = vmatpush.msra.mxu0 %v134
  %311 = vmatpush.msra.mxu0 %v133
  %312 = vmatpush.msra.mxu0 %v132
  %313 = vmatmul.f32.gmra.mxu0 %v295
  %v314 = vpop.f32.mrf.mxu0
  %v315 = vadd.f32 0.0, %v314
  %316 = vdwg.mxu0
  %v317 = vadd.f32 %v101, %v315
  %v318 = vadd.f32 %v317, %v162
  %v319 = vtanh.pop %v318
  %v320 = vxor.u32 %v318, 2147483648
  %v321 = vmul.f32 %v320, 1.442695
  %v322 = vpow.pop %v321
  %v323 = vadd.f32 %v322, 1.0
  %v324 = vrcp.pop %v323
  %v325 = vmul.f32 %v323, %v324
  %v326 = vsub.f32 1.0, %v325
  %v327 = vmul.f32 %v324, %v326
  %v328 = vadd.f32 %v324, %v327
  %vm329 = vweird.f32 %v323
  %vm330 = vweird.f32 %v324
  %vm331 = vmor %vm329, %vm330
  %v332 = vsel %vm331, %v324, %v328
  %v333 = vand.u32 2147483647, %v323
  %vm334 = vcmp.eq.f32.partialorder %v333, 8.507059e+37
  %v335 = vand.u32 %v323, 2147483648
  %v336 = vor.u32 1.1754944e-38, %v335
  %v337 = vsel %vm334, %v336, %v332
  %v338 = vmul.f32 1.0, %v337
  %v339 = vsel %vm125, %v319, %v338
  %v340 = vmul.f32 %v339, %v200
  %342 = vrot.lane.b32.xlu0 %v339, 64
  %v343 = vpop.permute.xlu0 %342
  %v345 = vmul.f32 %v339, %v343
  %347 = vrot.lane.b32.xlu0 %v345, 32
  %v348 = vpop.permute.xlu0 %347
  %v350 = vadd.f32 %v340, %v348
  %v351 = vtanh.pop %v350
  %353 = vrot.lane.b32.xlu0 %v351, 64
  %v354 = vpop.permute.xlu0 %353
  %v356 = vmul.f32 %v339, %v354
  %358 = vrot.lane.b32.xlu0 %v356, 32
  %v359 = vpop.permute.xlu0 %358
  %362 = vrot.lane.b32.xlu0 %v294, 64
  %v363 = vpop.permute.xlu0 %362
  %v365 = vsel %vm55, %v359, %v363
  %v367 = vsel %vm229, %v365, 0
  %369 = vmatpush.msra.mxu0 0.0
  %370 = vmatpush.msra.mxu0 0.0
  %371 = vmatpush.msra.mxu0 0.0
  %372 = vmatpush.msra.mxu0 0.0
  %373 = vmatpush.msra.mxu0 0.0
  %374 = vmatpush.msra.mxu0 0.0
  %375 = vmatpush.msra.mxu0 0.0
  %376 = vmatpush.msra.mxu0 0.0
  %377 = vmatpush.msra.mxu0 %v223
  %378 = vmatpush.msra.mxu0 %v222
  %379 = vmatpush.msra.mxu0 %v221
  %380 = vmatpush.msra.mxu0 %v220
  %381 = vmatpush.msra.mxu0 %v219
  %382 = vmatpush.msra.mxu0 %v218
  %383 = vmatpush.msra.mxu0 %v217
  %384 = vmatpush.msra.mxu0 %v216
  %385 = vmatmul.f32.gmra.mxu0 %v367
  %v386 = vpop.f32.mrf.mxu0
  %v387 = vadd.f32 %v227, %v386
  %388 = vdwg.mxu0
  %v389 = vtanh.pop %v387
  %v390 = vxor.u32 %v387, 2147483648
  %v391 = vmul.f32 %v390, 1.442695
  %v392 = vpow.pop %v391
  %v393 = vadd.f32 %v392, 1.0
  %v394 = vrcp.pop %v393
  %v395 = vmul.f32 %v393, %v394
  %v396 = vsub.f32 1.0, %v395
  %v397 = vmul.f32 %v394, %v396
  %v398 = vadd.f32 %v394, %v397
  %vm399 = vweird.f32 %v393
  %vm400 = vweird.f32 %v394
  %vm401 = vmor %vm399, %vm400
  %v402 = vsel %vm401, %v394, %v398
  %v403 = vand.u32 2147483647, %v393
  %vm404 = vcmp.eq.f32.partialorder %v403, 8.507059e+37
  %v405 = vand.u32 %v393, 2147483648
  %v406 = vor.u32 1.1754944e-38, %v405
  %v407 = vsel %vm404, %v406, %v402
  %v408 = vmul.f32 1.0, %v407
  %v409 = vsel %vm125, %v389, %v408
  %v410 = vmul.f32 %v409, %v288
  %412 = vrot.lane.b32.xlu0 %v409, 64
  %v413 = vpop.permute.xlu0 %412
  %v415 = vmul.f32 %v409, %v413
  %417 = vrot.lane.b32.xlu0 %v415, 32
  %v418 = vpop.permute.xlu0 %417
  %v420 = vadd.f32 %v410, %v418
  %v421 = vtanh.pop %v420
  %423 = vrot.lane.b32.xlu0 %v421, 64
  %v424 = vpop.permute.xlu0 %423
  %v426 = vmul.f32 %v409, %v424
  %v427 = vsel %vm55, %v359, 0
  %429 = vmatpush.msra.mxu0 0.0
  %430 = vmatpush.msra.mxu0 0.0
  %431 = vmatpush.msra.mxu0 0.0
  %432 = vmatpush.msra.mxu0 0.0
  %433 = vmatpush.msra.mxu0 0.0
  %434 = vmatpush.msra.mxu0 0.0
  %435 = vmatpush.msra.mxu0 0.0
  %436 = vmatpush.msra.mxu0 0.0
  %437 = vmatpush.msra.mxu0 0.0
  %438 = vmatpush.msra.mxu0 0.0
  %439 = vmatpush.msra.mxu0 0.0
  %440 = vmatpush.msra.mxu0 0.0
  %441 = vmatpush.msra.mxu0 %v135
  %442 = vmatpush.msra.mxu0 %v134
  %443 = vmatpush.msra.mxu0 %v133
  %444 = vmatpush.msra.mxu0 %v132
  %445 = vmatmul.f32.gmra.mxu0 %v427
  %v446 = vpop.f32.mrf.mxu0
  %v447 = vadd.f32 0.0, %v446
  %448 = vdwg.mxu0
  %v449 = vadd.f32 %v104, %v447
  %v450 = vadd.f32 %v449, %v162
  %v451 = vtanh.pop %v450
  %v452 = vxor.u32 %v450, 2147483648
  %v453 = vmul.f32 %v452, 1.442695
  %v454 = vpow.pop %v453
  %v455 = vadd.f32 %v454, 1.0
  %v456 = vrcp.pop %v455
  %v457 = vmul.f32 %v455, %v456
  %v458 = vsub.f32 1.0, %v457
  %v459 = vmul.f32 %v456, %v458
  %v460 = vadd.f32 %v456, %v459
  %vm461 = vweird.f32 %v455
  %vm462 = vweird.f32 %v456
  %vm463 = vmor %vm461, %vm462
  %v464 = vsel %vm463, %v456, %v460
  %v465 = vand.u32 2147483647, %v455
  %vm466 = vcmp.eq.f32.partialorder %v465, 8.507059e+37
  %v467 = vand.u32 %v455, 2147483648
  %v468 = vor.u32 1.1754944e-38, %v467
  %v469 = vsel %vm466, %v468, %v464
  %v470 = vmul.f32 1.0, %v469
  %v471 = vsel %vm125, %v451, %v470
  %v472 = vmul.f32 %v471, %v350
  %474 = vrot.lane.b32.xlu0 %v471, 64
  %v475 = vpop.permute.xlu0 %474
  %v477 = vmul.f32 %v471, %v475
  %479 = vrot.lane.b32.xlu0 %v477, 32
  %v480 = vpop.permute.xlu0 %479
  %v482 = vadd.f32 %v472, %v480
  %v483 = vtanh.pop %v482
  %485 = vrot.lane.b32.xlu0 %v483, 64
  %v486 = vpop.permute.xlu0 %485
  %v488 = vmul.f32 %v471, %v486
  %490 = vrot.lane.b32.xlu0 %v488, 32
  %v491 = vpop.permute.xlu0 %490
  %494 = vrot.lane.b32.xlu0 %v426, 64
  %v495 = vpop.permute.xlu0 %494
  %v497 = vsel %vm55, %v491, %v495
  %v499 = vsel %vm229, %v497, 0
  %501 = vmatpush.msra.mxu0 0.0
  %502 = vmatpush.msra.mxu0 0.0
  %503 = vmatpush.msra.mxu0 0.0
  %504 = vmatpush.msra.mxu0 0.0
  %505 = vmatpush.msra.mxu0 0.0
  %506 = vmatpush.msra.mxu0 0.0
  %507 = vmatpush.msra.mxu0 0.0
  %508 = vmatpush.msra.mxu0 0.0
  %509 = vmatpush.msra.mxu0 %v223
  %510 = vmatpush.msra.mxu0 %v222
  %511 = vmatpush.msra.mxu0 %v221
  %512 = vmatpush.msra.mxu0 %v220
  %513 = vmatpush.msra.mxu0 %v219
  %514 = vmatpush.msra.mxu0 %v218
  %515 = vmatpush.msra.mxu0 %v217
  %516 = vmatpush.msra.mxu0 %v216
  %517 = vmatmul.f32.gmra.mxu0 %v499
  %v518 = vpop.f32.mrf.mxu0
  %v519 = vadd.f32 %v227, %v518
  %520 = vdwg.mxu0
  %v521 = vtanh.pop %v519
  %v522 = vxor.u32 %v519, 2147483648
  %v523 = vmul.f32 %v522, 1.442695
  %v524 = vpow.pop %v523
  %v525 = vadd.f32 %v524, 1.0
  %v526 = vrcp.pop %v525
  %v527 = vmul.f32 %v525, %v526
  %v528 = vsub.f32 1.0, %v527
  %v529 = vmul.f32 %v526, %v528
  %v530 = vadd.f32 %v526, %v529
  %vm531 = vweird.f32 %v525
  %vm532 = vweird.f32 %v526
  %vm533 = vmor %vm531, %vm532
  %v534 = vsel %vm533, %v526, %v530
  %v535 = vand.u32 2147483647, %v525
  %vm536 = vcmp.eq.f32.partialorder %v535, 8.507059e+37
  %v537 = vand.u32 %v525, 2147483648
  %v538 = vor.u32 1.1754944e-38, %v537
  %v539 = vsel %vm536, %v538, %v534
  %v540 = vmul.f32 1.0, %v539
  %v541 = vsel %vm125, %v521, %v540
  %v542 = vmul.f32 %v541, %v420
  %544 = vrot.lane.b32.xlu0 %v541, 64
  %v545 = vpop.permute.xlu0 %544
  %v547 = vmul.f32 %v541, %v545
  %549 = vrot.lane.b32.xlu0 %v547, 32
  %v550 = vpop.permute.xlu0 %549
  %v552 = vadd.f32 %v542, %v550
  %v553 = vtanh.pop %v552
  %555 = vrot.lane.b32.xlu0 %v553, 64
  %v556 = vpop.permute.xlu0 %555
  %v558 = vmul.f32 %v541, %v556
  %v559 = vsel %vm55, %v491, 0
  %561 = vmatpush.msra.mxu0 0.0
  %562 = vmatpush.msra.mxu0 0.0
  %563 = vmatpush.msra.mxu0 0.0
  %564 = vmatpush.msra.mxu0 0.0
  %565 = vmatpush.msra.mxu0 0.0
  %566 = vmatpush.msra.mxu0 0.0
  %567 = vmatpush.msra.mxu0 0.0
  %568 = vmatpush.msra.mxu0 0.0
  %569 = vmatpush.msra.mxu0 0.0
  %570 = vmatpush.msra.mxu0 0.0
  %571 = vmatpush.msra.mxu0 0.0
  %572 = vmatpush.msra.mxu0 0.0
  %573 = vmatpush.msra.mxu0 %v135
  %574 = vmatpush.msra.mxu0 %v134
  %575 = vmatpush.msra.mxu0 %v133
  %576 = vmatpush.msra.mxu0 %v132
  %577 = vmatmul.f32.gmra.mxu0 %v559
  %v578 = vpop.f32.mrf.mxu0
  %v579 = vadd.f32 0.0, %v578
  %580 = vdwg.mxu0
  %v581 = vadd.f32 %v107, %v579
  %v582 = vadd.f32 %v581, %v162
  %v583 = vtanh.pop %v582
  %v584 = vxor.u32 %v582, 2147483648
  %v585 = vmul.f32 %v584, 1.442695
  %v586 = vpow.pop %v585
  %v587 = vadd.f32 %v586, 1.0
  %v588 = vrcp.pop %v587
  %v589 = vmul.f32 %v587, %v588
  %v590 = vsub.f32 1.0, %v589
  %v591 = vmul.f32 %v588, %v590
  %v592 = vadd.f32 %v588, %v591
  %vm593 = vweird.f32 %v587
  %vm594 = vweird.f32 %v588
  %vm595 = vmor %vm593, %vm594
  %v596 = vsel %vm595, %v588, %v592
  %v597 = vand.u32 2147483647, %v587
  %vm598 = vcmp.eq.f32.partialorder %v597, 8.507059e+37
  %v599 = vand.u32 %v587, 2147483648
  %v600 = vor.u32 1.1754944e-38, %v599
  %v601 = vsel %vm598, %v600, %v596
  %v602 = vmul.f32 1.0, %v601
  %v603 = vsel %vm125, %v583, %v602
  %v604 = vmul.f32 %v603, %v482
  %606 = vrot.lane.b32.xlu0 %v603, 64
  %v607 = vpop.permute.xlu0 %606
  %v609 = vmul.f32 %v603, %v607
  %611 = vrot.lane.b32.xlu0 %v609, 32
  %v612 = vpop.permute.xlu0 %611
  %v614 = vadd.f32 %v604, %v612
  %v615 = vtanh.pop %v614
  %617 = vrot.lane.b32.xlu0 %v615, 64
  %v618 = vpop.permute.xlu0 %617
  %v620 = vmul.f32 %v603, %v618
  %622 = vrot.lane.b32.xlu0 %v620, 32
  %v623 = vpop.permute.xlu0 %622
  %626 = vrot.lane.b32.xlu0 %v558, 64
  %v627 = vpop.permute.xlu0 %626
  %v629 = vsel %vm55, %v623, %v627
  %v631 = vsel %vm229, %v629, 0
  %633 = vmatpush.msra.mxu0 0.0
  %634 = vmatpush.msra.mxu0 0.0
  %635 = vmatpush.msra.mxu0 0.0
  %636 = vmatpush.msra.mxu0 0.0
  %637 = vmatpush.msra.mxu0 0.0
  %638 = vmatpush.msra.mxu0 0.0
  %639 = vmatpush.msra.mxu0 0.0
  %640 = vmatpush.msra.mxu0 0.0
  %641 = vmatpush.msra.mxu0 %v223
  %642 = vmatpush.msra.mxu0 %v222
  %643 = vmatpush.msra.mxu0 %v221
  %644 = vmatpush.msra.mxu0 %v220
  %645 = vmatpush.msra.mxu0 %v219
  %646 = vmatpush.msra.mxu0 %v218
  %647 = vmatpush.msra.mxu0 %v217
  %648 = vmatpush.msra.mxu0 %v216
  %649 = vmatmul.f32.gmra.mxu0 %v631
  %v650 = vpop.f32.mrf.mxu0
  %v651 = vadd.f32 %v227, %v650
  %652 = vdwg.mxu0
  %v653 = vtanh.pop %v651
  %v654 = vxor.u32 %v651, 2147483648
  %v655 = vmul.f32 %v654, 1.442695
  %v656 = vpow.pop %v655
  %v657 = vadd.f32 %v656, 1.0
  %v658 = vrcp.pop %v657
  %v659 = vmul.f32 %v657, %v658
  %v660 = vsub.f32 1.0, %v659
  %v661 = vmul.f32 %v658, %v660
  %v662 = vadd.f32 %v658, %v661
  %vm663 = vweird.f32 %v657
  %vm664 = vweird.f32 %v658
  %vm665 = vmor %vm663, %vm664
  %v666 = vsel %vm665, %v658, %v662
  %v667 = vand.u32 2147483647, %v657
  %vm668 = vcmp.eq.f32.partialorder %v667, 8.507059e+37
  %v669 = vand.u32 %v657, 2147483648
  %v670 = vor.u32 1.1754944e-38, %v669
  %v671 = vsel %vm668, %v670, %v666
  %v672 = vmul.f32 1.0, %v671
  %v673 = vsel %vm125, %v653, %v672
  %v674 = vmul.f32 %v673, %v552
  %676 = vrot.lane.b32.xlu0 %v673, 64
  %v677 = vpop.permute.xlu0 %676
  %v679 = vmul.f32 %v673, %v677
  %681 = vrot.lane.b32.xlu0 %v679, 32
  %v682 = vpop.permute.xlu0 %681
  %v684 = vadd.f32 %v674, %v682
  %v685 = vtanh.pop %v684
  %687 = vrot.lane.b32.xlu0 %v685, 64
  %v688 = vpop.permute.xlu0 %687
  %v690 = vmul.f32 %v673, %v688
  %v691 = vsel %vm55, %v623, 0
  %693 = vmatpush.msra.mxu0 0.0
  %694 = vmatpush.msra.mxu0 0.0
  %695 = vmatpush.msra.mxu0 0.0
  %696 = vmatpush.msra.mxu0 0.0
  %697 = vmatpush.msra.mxu0 0.0
  %698 = vmatpush.msra.mxu0 0.0
  %699 = vmatpush.msra.mxu0 0.0
  %700 = vmatpush.msra.mxu0 0.0
  %701 = vmatpush.msra.mxu0 0.0
  %702 = vmatpush.msra.mxu0 0.0
  %703 = vmatpush.msra.mxu0 0.0
  %704 = vmatpush.msra.mxu0 0.0
  %705 = vmatpush.msra.mxu0 %v135
  %706 = vmatpush.msra.mxu0 %v134
  %707 = vmatpush.msra.mxu0 %v133
  %708 = vmatpush.msra.mxu0 %v132
  %709 = vmatmul.f32.gmra.mxu0 %v691
  %v710 = vpop.f32.mrf.mxu0
  %v711 = vadd.f32 0.0, %v710
  %712 = vdwg.mxu0
  %v713 = vadd.f32 %v110, %v711
  %v714 = vadd.f32 %v713, %v162
  %v715 = vtanh.pop %v714
  %v716 = vxor.u32 %v714, 2147483648
  %v717 = vmul.f32 %v716, 1.442695
  %v718 = vpow.pop %v717
  %v719 = vadd.f32 %v718, 1.0
  %v720 = vrcp.pop %v719
  %v721 = vmul.f32 %v719, %v720
  %v722 = vsub.f32 1.0, %v721
  %v723 = vmul.f32 %v720, %v722
  %v724 = vadd.f32 %v720, %v723
  %vm725 = vweird.f32 %v719
  %vm726 = vweird.f32 %v720
  %vm727 = vmor %vm725, %vm726
  %v728 = vsel %vm727, %v720, %v724
  %v729 = vand.u32 2147483647, %v719
  %vm730 = vcmp.eq.f32.partialorder %v729, 8.507059e+37
  %v731 = vand.u32 %v719, 2147483648
  %v732 = vor.u32 1.1754944e-38, %v731
  %v733 = vsel %vm730, %v732, %v728
  %v734 = vmul.f32 1.0, %v733
  %v735 = vsel %vm125, %v715, %v734
  %v736 = vmul.f32 %v735, %v614
  %738 = vrot.lane.b32.xlu0 %v735, 64
  %v739 = vpop.permute.xlu0 %738
  %v741 = vmul.f32 %v735, %v739
  %743 = vrot.lane.b32.xlu0 %v741, 32
  %v744 = vpop.permute.xlu0 %743
  %v746 = vadd.f32 %v736, %v744
  %v747 = vtanh.pop %v746
  %749 = vrot.lane.b32.xlu0 %v747, 64
  %v750 = vpop.permute.xlu0 %749
  %v752 = vmul.f32 %v735, %v750
  %754 = vrot.lane.b32.xlu0 %v752, 32
  %v755 = vpop.permute.xlu0 %754
  %758 = vrot.lane.b32.xlu0 %v690, 64
  %v759 = vpop.permute.xlu0 %758
  %v761 = vsel %vm55, %v755, %v759
  %v763 = vsel %vm229, %v761, 0
  %765 = vmatpush.msra.mxu0 0.0
  %766 = vmatpush.msra.mxu0 0.0
  %767 = vmatpush.msra.mxu0 0.0
  %768 = vmatpush.msra.mxu0 0.0
  %769 = vmatpush.msra.mxu0 0.0
  %770 = vmatpush.msra.mxu0 0.0
  %771 = vmatpush.msra.mxu0 0.0
  %772 = vmatpush.msra.mxu0 0.0
  %773 = vmatpush.msra.mxu0 %v223
  %774 = vmatpush.msra.mxu0 %v222
  %775 = vmatpush.msra.mxu0 %v221
  %776 = vmatpush.msra.mxu0 %v220
  %777 = vmatpush.msra.mxu0 %v219
  %778 = vmatpush.msra.mxu0 %v218
  %779 = vmatpush.msra.mxu0 %v217
  %780 = vmatpush.msra.mxu0 %v216
  %781 = vmatmul.f32.gmra.mxu0 %v763
  %v782 = vpop.f32.mrf.mxu0
  %v783 = vadd.f32 %v227, %v782
  %784 = vdwg.mxu0
  %v785 = vtanh.pop %v783
  %v786 = vxor.u32 %v783, 2147483648
  %v787 = vmul.f32 %v786, 1.442695
  %v788 = vpow.pop %v787
  %v789 = vadd.f32 %v788, 1.0
  %v790 = vrcp.pop %v789
  %v791 = vmul.f32 %v789, %v790
  %v792 = vsub.f32 1.0, %v791
  %v793 = vmul.f32 %v790, %v792
  %v794 = vadd.f32 %v790, %v793
  %vm795 = vweird.f32 %v789
  %vm796 = vweird.f32 %v790
  %vm797 = vmor %vm795, %vm796
  %v798 = vsel %vm797, %v790, %v794
  %v799 = vand.u32 2147483647, %v789
  %vm800 = vcmp.eq.f32.partialorder %v799, 8.507059e+37
  %v801 = vand.u32 %v789, 2147483648
  %v802 = vor.u32 1.1754944e-38, %v801
  %v803 = vsel %vm800, %v802, %v798
  %v804 = vmul.f32 1.0, %v803
  %v805 = vsel %vm125, %v785, %v804
  %v806 = vmul.f32 %v805, %v684
  %808 = vrot.lane.b32.xlu0 %v805, 64
  %v809 = vpop.permute.xlu0 %808
  %v811 = vmul.f32 %v805, %v809
  %813 = vrot.lane.b32.xlu0 %v811, 32
  %v814 = vpop.permute.xlu0 %813
  %v816 = vadd.f32 %v806, %v814
  %v817 = vtanh.pop %v816
  %819 = vrot.lane.b32.xlu0 %v817, 64
  %v820 = vpop.permute.xlu0 %819
  %v822 = vmul.f32 %v805, %v820
  %v823 = vsel %vm55, %v755, 0
  %825 = vmatpush.msra.mxu0 0.0
  %826 = vmatpush.msra.mxu0 0.0
  %827 = vmatpush.msra.mxu0 0.0
  %828 = vmatpush.msra.mxu0 0.0
  %829 = vmatpush.msra.mxu0 0.0
  %830 = vmatpush.msra.mxu0 0.0
  %831 = vmatpush.msra.mxu0 0.0
  %832 = vmatpush.msra.mxu0 0.0
  %833 = vmatpush.msra.mxu0 0.0
  %834 = vmatpush.msra.mxu0 0.0
  %835 = vmatpush.msra.mxu0 0.0
  %836 = vmatpush.msra.mxu0 0.0
  %837 = vmatpush.msra.mxu0 %v135
  %838 = vmatpush.msra.mxu0 %v134
  %839 = vmatpush.msra.mxu0 %v133
  %840 = vmatpush.msra.mxu0 %v132
  %841 = vmatmul.f32.gmra.mxu0 %v823
  %v842 = vpop.f32.mrf.mxu0
  %v843 = vadd.f32 0.0, %v842
  %844 = vdwg.mxu0
  %v845 = vadd.f32 %v113, %v843
  %v846 = vadd.f32 %v845, %v162
  %v847 = vtanh.pop %v846
  %v848 = vxor.u32 %v846, 2147483648
  %v849 = vmul.f32 %v848, 1.442695
  %v850 = vpow.pop %v849
  %v851 = vadd.f32 %v850, 1.0
  %v852 = vrcp.pop %v851
  %v853 = vmul.f32 %v851, %v852
  %v854 = vsub.f32 1.0, %v853
  %v855 = vmul.f32 %v852, %v854
  %v856 = vadd.f32 %v852, %v855
  %vm857 = vweird.f32 %v851
  %vm858 = vweird.f32 %v852
  %vm859 = vmor %vm857, %vm858
  %v860 = vsel %vm859, %v852, %v856
  %v861 = vand.u32 2147483647, %v851
  %vm862 = vcmp.eq.f32.partialorder %v861, 8.507059e+37
  %v863 = vand.u32 %v851, 2147483648
  %v864 = vor.u32 1.1754944e-38, %v863
  %v865 = vsel %vm862, %v864, %v860
  %v866 = vmul.f32 1.0, %v865
  %v867 = vsel %vm125, %v847, %v866
  %v868 = vmul.f32 %v867, %v746
  %870 = vrot.lane.b32.xlu0 %v867, 64
  %v871 = vpop.permute.xlu0 %870
  %v873 = vmul.f32 %v867, %v871
  %875 = vrot.lane.b32.xlu0 %v873, 32
  %v876 = vpop.permute.xlu0 %875
  %v878 = vadd.f32 %v868, %v876
  %v879 = vtanh.pop %v878
  %881 = vrot.lane.b32.xlu0 %v879, 64
  %v882 = vpop.permute.xlu0 %881
  %v884 = vmul.f32 %v867, %v882
  %886 = vrot.lane.b32.xlu0 %v884, 32
  %v887 = vpop.permute.xlu0 %886
  %890 = vrot.lane.b32.xlu0 %v822, 64
  %v891 = vpop.permute.xlu0 %890
  %v893 = vsel %vm55, %v887, %v891
  %v895 = vsel %vm229, %v893, 0
  %897 = vmatpush.msra.mxu0 0.0
  %898 = vmatpush.msra.mxu0 0.0
  %899 = vmatpush.msra.mxu0 0.0
  %900 = vmatpush.msra.mxu0 0.0
  %901 = vmatpush.msra.mxu0 0.0
  %902 = vmatpush.msra.mxu0 0.0
  %903 = vmatpush.msra.mxu0 0.0
  %904 = vmatpush.msra.mxu0 0.0
  %905 = vmatpush.msra.mxu0 %v223
  %906 = vmatpush.msra.mxu0 %v222
  %907 = vmatpush.msra.mxu0 %v221
  %908 = vmatpush.msra.mxu0 %v220
  %909 = vmatpush.msra.mxu0 %v219
  %910 = vmatpush.msra.mxu0 %v218
  %911 = vmatpush.msra.mxu0 %v217
  %912 = vmatpush.msra.mxu0 %v216
  %913 = vmatmul.f32.gmra.mxu0 %v895
  %v914 = vpop.f32.mrf.mxu0
  %v915 = vadd.f32 %v227, %v914
  %916 = vdwg.mxu0
  %v917 = vtanh.pop %v915
  %v918 = vxor.u32 %v915, 2147483648
  %v919 = vmul.f32 %v918, 1.442695
  %v920 = vpow.pop %v919
  %v921 = vadd.f32 %v920, 1.0
  %v922 = vrcp.pop %v921
  %v923 = vmul.f32 %v921, %v922
  %v924 = vsub.f32 1.0, %v923
  %v925 = vmul.f32 %v922, %v924
  %v926 = vadd.f32 %v922, %v925
  %vm927 = vweird.f32 %v921
  %vm928 = vweird.f32 %v922
  %vm929 = vmor %vm927, %vm928
  %v930 = vsel %vm929, %v922, %v926
  %v931 = vand.u32 2147483647, %v921
  %vm932 = vcmp.eq.f32.partialorder %v931, 8.507059e+37
  %v933 = vand.u32 %v921, 2147483648
  %v934 = vor.u32 1.1754944e-38, %v933
  %v935 = vsel %vm932, %v934, %v930
  %v936 = vmul.f32 1.0, %v935
  %v937 = vsel %vm125, %v917, %v936
  %v938 = vmul.f32 %v937, %v816
  %940 = vrot.lane.b32.xlu0 %v937, 64
  %v941 = vpop.permute.xlu0 %940
  %v943 = vmul.f32 %v937, %v941
  %945 = vrot.lane.b32.xlu0 %v943, 32
  %v946 = vpop.permute.xlu0 %945
  %v948 = vadd.f32 %v938, %v946
  %v949 = vtanh.pop %v948
  %951 = vrot.lane.b32.xlu0 %v949, 64
  %v952 = vpop.permute.xlu0 %951
  %v954 = vmul.f32 %v937, %v952
  %v955 = vsel %vm55, %v887, 0
  %957 = vmatpush.msra.mxu0 0.0
  %958 = vmatpush.msra.mxu0 0.0
  %959 = vmatpush.msra.mxu0 0.0
  %960 = vmatpush.msra.mxu0 0.0
  %961 = vmatpush.msra.mxu0 0.0
  %962 = vmatpush.msra.mxu0 0.0
  %963 = vmatpush.msra.mxu0 0.0
  %964 = vmatpush.msra.mxu0 0.0
  %965 = vmatpush.msra.mxu0 0.0
  %966 = vmatpush.msra.mxu0 0.0
  %967 = vmatpush.msra.mxu0 0.0
  %968 = vmatpush.msra.mxu0 0.0
  %969 = vmatpush.msra.mxu0 %v135
  %970 = vmatpush.msra.mxu0 %v134
  %971 = vmatpush.msra.mxu0 %v133
  %972 = vmatpush.msra.mxu0 %v132
  %973 = vmatmul.f32.gmra.mxu0 %v955
  %v974 = vpop.f32.mrf.mxu0
  %v975 = vadd.f32 0.0, %v974
  %976 = vdwg.mxu0
  %v977 = vadd.f32 %v116, %v975
  %v978 = vadd.f32 %v977, %v162
  %v979 = vtanh.pop %v978
  %v980 = vxor.u32 %v978, 2147483648
  %v981 = vmul.f32 %v980, 1.442695
  %v982 = vpow.pop %v981
  %v983 = vadd.f32 %v982, 1.0
  %v984 = vrcp.pop %v983
  %v985 = vmul.f32 %v983, %v984
  %v986 = vsub.f32 1.0, %v985
  %v987 = vmul.f32 %v984, %v986
  %v988 = vadd.f32 %v984, %v987
  %vm989 = vweird.f32 %v983
  %vm990 = vweird.f32 %v984
  %vm991 = vmor %vm989, %vm990
  %v992 = vsel %vm991, %v984, %v988
  %v993 = vand.u32 2147483647, %v983
  %vm994 = vcmp.eq.f32.partialorder %v993, 8.507059e+37
  %v995 = vand.u32 %v983, 2147483648
  %v996 = vor.u32 1.1754944e-38, %v995
  %v997 = vsel %vm994, %v996, %v992
  %v998 = vmul.f32 1.0, %v997
  %v999 = vsel %vm125, %v979, %v998
  %v1000 = vmul.f32 %v999, %v878
  %1002 = vrot.lane.b32.xlu0 %v999, 64
  %v1003 = vpop.permute.xlu0 %1002
  %v1005 = vmul.f32 %v999, %v1003
  %1007 = vrot.lane.b32.xlu0 %v1005, 32
  %v1008 = vpop.permute.xlu0 %1007
  %v1010 = vadd.f32 %v1000, %v1008
  %v1011 = vtanh.pop %v1010
  %1013 = vrot.lane.b32.xlu0 %v1011, 64
  %v1014 = vpop.permute.xlu0 %1013
  %v1016 = vmul.f32 %v999, %v1014
  %1018 = vrot.lane.b32.xlu0 %v1016, 32
  %v1019 = vpop.permute.xlu0 %1018
  %1022 = vrot.lane.b32.xlu0 %v954, 64
  %v1023 = vpop.permute.xlu0 %1022
  %v1025 = vsel %vm55, %v1019, %v1023
  %v1027 = vsel %vm229, %v1025, 0
  %1029 = vmatpush.msra.mxu0 0.0
  %1030 = vmatpush.msra.mxu0 0.0
  %1031 = vmatpush.msra.mxu0 0.0
  %1032 = vmatpush.msra.mxu0 0.0
  %1033 = vmatpush.msra.mxu0 0.0
  %1034 = vmatpush.msra.mxu0 0.0
  %1035 = vmatpush.msra.mxu0 0.0
  %1036 = vmatpush.msra.mxu0 0.0
  %1037 = vmatpush.msra.mxu0 %v223
  %1038 = vmatpush.msra.mxu0 %v222
  %1039 = vmatpush.msra.mxu0 %v221
  %1040 = vmatpush.msra.mxu0 %v220
  %1041 = vmatpush.msra.mxu0 %v219
  %1042 = vmatpush.msra.mxu0 %v218
  %1043 = vmatpush.msra.mxu0 %v217
  %1044 = vmatpush.msra.mxu0 %v216
  %1045 = vmatmul.f32.gmra.mxu0 %v1027
  %v1046 = vpop.f32.mrf.mxu0
  %v1047 = vadd.f32 %v227, %v1046
  %1048 = vdwg.mxu0
  %v1049 = vtanh.pop %v1047
  %v1050 = vxor.u32 %v1047, 2147483648
  %v1051 = vmul.f32 %v1050, 1.442695
  %v1052 = vpow.pop %v1051
  %v1053 = vadd.f32 %v1052, 1.0
  %v1054 = vrcp.pop %v1053
  %v1055 = vmul.f32 %v1053, %v1054
  %v1056 = vsub.f32 1.0, %v1055
  %v1057 = vmul.f32 %v1054, %v1056
  %v1058 = vadd.f32 %v1054, %v1057
  %vm1059 = vweird.f32 %v1053
  %vm1060 = vweird.f32 %v1054
  %vm1061 = vmor %vm1059, %vm1060
  %v1062 = vsel %vm1061, %v1054, %v1058
  %v1063 = vand.u32 2147483647, %v1053
  %vm1064 = vcmp.eq.f32.partialorder %v1063, 8.507059e+37
  %v1065 = vand.u32 %v1053, 2147483648
  %v1066 = vor.u32 1.1754944e-38, %v1065
  %v1067 = vsel %vm1064, %v1066, %v1062
  %v1068 = vmul.f32 1.0, %v1067
  %v1069 = vsel %vm125, %v1049, %v1068
  %v1070 = vmul.f32 %v1069, %v948
  %1072 = vrot.lane.b32.xlu0 %v1069, 64
  %v1073 = vpop.permute.xlu0 %1072
  %v1075 = vmul.f32 %v1069, %v1073
  %1077 = vrot.lane.b32.xlu0 %v1075, 32
  %v1078 = vpop.permute.xlu0 %1077
  %v1080 = vadd.f32 %v1070, %v1078
  %v1081 = vtanh.pop %v1080
  %1083 = vrot.lane.b32.xlu0 %v1081, 64
  %v1084 = vpop.permute.xlu0 %1083
  %v1086 = vmul.f32 %v1069, %v1084
  %v1087 = vsel %vm55, %v1019, 0
  %1089 = vmatpush.msra.mxu0 0.0
  %1090 = vmatpush.msra.mxu0 0.0
  %1091 = vmatpush.msra.mxu0 0.0
  %1092 = vmatpush.msra.mxu0 0.0
  %1093 = vmatpush.msra.mxu0 0.0
  %1094 = vmatpush.msra.mxu0 0.0
  %1095 = vmatpush.msra.mxu0 0.0
  %1096 = vmatpush.msra.mxu0 0.0
  %1097 = vmatpush.msra.mxu0 0.0
  %1098 = vmatpush.msra.mxu0 0.0
  %1099 = vmatpush.msra.mxu0 0.0
  %1100 = vmatpush.msra.mxu0 0.0
  %1101 = vmatpush.msra.mxu0 %v135
  %1102 = vmatpush.msra.mxu0 %v134
  %1103 = vmatpush.msra.mxu0 %v133
  %1104 = vmatpush.msra.mxu0 %v132
  %1105 = vmatmul.f32.gmra.mxu0 %v1087
  %v1106 = vpop.f32.mrf.mxu0
  %v1107 = vadd.f32 0.0, %v1106
  %1108 = vdwg.mxu0
  %v1109 = vadd.f32 %v119, %v1107
  %v1110 = vadd.f32 %v1109, %v162
  %v1111 = vtanh.pop %v1110
  %v1112 = vxor.u32 %v1110, 2147483648
  %v1113 = vmul.f32 %v1112, 1.442695
  %v1114 = vpow.pop %v1113
  %v1115 = vadd.f32 %v1114, 1.0
  %v1116 = vrcp.pop %v1115
  %v1117 = vmul.f32 %v1115, %v1116
  %v1118 = vsub.f32 1.0, %v1117
  %v1119 = vmul.f32 %v1116, %v1118
  %v1120 = vadd.f32 %v1116, %v1119
  %vm1121 = vweird.f32 %v1115
  %vm1122 = vweird.f32 %v1116
  %vm1123 = vmor %vm1121, %vm1122
  %v1124 = vsel %vm1123, %v1116, %v1120
  %v1125 = vand.u32 2147483647, %v1115
  %vm1126 = vcmp.eq.f32.partialorder %v1125, 8.507059e+37
  %v1127 = vand.u32 %v1115, 2147483648
  %v1128 = vor.u32 1.1754944e-38, %v1127
  %v1129 = vsel %vm1126, %v1128, %v1124
  %v1130 = vmul.f32 1.0, %v1129
  %v1131 = vsel %vm125, %v1111, %v1130
  %v1132 = vmul.f32 %v1131, %v1010
  %1134 = vrot.lane.b32.xlu0 %v1131, 64
  %v1135 = vpop.permute.xlu0 %1134
  %v1137 = vmul.f32 %v1131, %v1135
  %1139 = vrot.lane.b32.xlu0 %v1137, 32
  %v1140 = vpop.permute.xlu0 %1139
  %v1142 = vadd.f32 %v1132, %v1140
  %v1143 = vtanh.pop %v1142
  %1145 = vrot.lane.b32.xlu0 %v1143, 64
  %v1146 = vpop.permute.xlu0 %1145
  %v1148 = vmul.f32 %v1131, %v1146
  %1150 = vrot.lane.b32.xlu0 %v1148, 32
  %v1151 = vpop.permute.xlu0 %1150
  %1154 = vrot.lane.b32.xlu0 %v1086, 64
  %v1155 = vpop.permute.xlu0 %1154
  %v1157 = vsel %vm55, %v1151, %v1155
  %v1159 = vsel %vm229, %v1157, 0
  %1161 = vmatpush.msra.mxu0 0.0
  %1162 = vmatpush.msra.mxu0 0.0
  %1163 = vmatpush.msra.mxu0 0.0
  %1164 = vmatpush.msra.mxu0 0.0
  %1165 = vmatpush.msra.mxu0 0.0
  %1166 = vmatpush.msra.mxu0 0.0
  %1167 = vmatpush.msra.mxu0 0.0
  %1168 = vmatpush.msra.mxu0 0.0
  %1169 = vmatpush.msra.mxu0 %v223
  %1170 = vmatpush.msra.mxu0 %v222
  %1171 = vmatpush.msra.mxu0 %v221
  %1172 = vmatpush.msra.mxu0 %v220
  %1173 = vmatpush.msra.mxu0 %v219
  %1174 = vmatpush.msra.mxu0 %v218
  %1175 = vmatpush.msra.mxu0 %v217
  %1176 = vmatpush.msra.mxu0 %v216
  %1177 = vmatmul.f32.gmra.mxu0 %v1159
  %v1178 = vpop.f32.mrf.mxu0
  %v1179 = vadd.f32 %v227, %v1178
  %1180 = vdwg.mxu0
  %v1181 = vtanh.pop %v1179
  %v1182 = vxor.u32 %v1179, 2147483648
  %v1183 = vmul.f32 %v1182, 1.442695
  %v1184 = vpow.pop %v1183
  %v1185 = vadd.f32 %v1184, 1.0
  %v1186 = vrcp.pop %v1185
  %v1187 = vmul.f32 %v1185, %v1186
  %v1188 = vsub.f32 1.0, %v1187
  %v1189 = vmul.f32 %v1186, %v1188
  %v1190 = vadd.f32 %v1186, %v1189
  %vm1191 = vweird.f32 %v1185
  %vm1192 = vweird.f32 %v1186
  %vm1193 = vmor %vm1191, %vm1192
  %v1194 = vsel %vm1193, %v1186, %v1190
  %v1195 = vand.u32 2147483647, %v1185
  %vm1196 = vcmp.eq.f32.partialorder %v1195, 8.507059e+37
  %v1197 = vand.u32 %v1185, 2147483648
  %v1198 = vor.u32 1.1754944e-38, %v1197
  %v1199 = vsel %vm1196, %v1198, %v1194
  %v1200 = vmul.f32 1.0, %v1199
  %v1201 = vsel %vm125, %v1181, %v1200
  %v1202 = vmul.f32 %v1201, %v1080
  %1204 = vrot.lane.b32.xlu0 %v1201, 64
  %v1205 = vpop.permute.xlu0 %1204
  %v1207 = vmul.f32 %v1201, %v1205
  %1209 = vrot.lane.b32.xlu0 %v1207, 32
  %v1210 = vpop.permute.xlu0 %1209
  %v1212 = vadd.f32 %v1202, %v1210
  %v1213 = vtanh.pop %v1212
  %1215 = vrot.lane.b32.xlu0 %v1213, 64
  %v1216 = vpop.permute.xlu0 %1215
  %v1218 = vmul.f32 %v1201, %v1216
  %v1219 = vld [vmem:[%s7] sm:$0xff]
  %v1220 = vld [vmem:[%s7 + $0x8] sm:$0xff]
  %v1221 = vld [vmem:[%s7 + $0x10] sm:$0xff]
  %v1222 = vld [vmem:[%s7 + $0x18] sm:$0xff]
  %v1223 = vld [vmem:[%s8] sm:$0x1]
  %v1225 = vperm.slane %v1223, 0
  %1228 = vrot.lane.b32.xlu0 %v294, 32
  %v1229 = vpop.permute.xlu0 %1228
  %1230 = vrot.lane.b32.xlu0 %v426, 32
  %v1231 = vpop.permute.xlu0 %1230
  %1232 = vrot.lane.b32.xlu0 %v558, 32
  %v1233 = vpop.permute.xlu0 %1232
  %1234 = vrot.lane.b32.xlu0 %v690, 32
  %v1235 = vpop.permute.xlu0 %1234
  %1236 = vrot.lane.b32.xlu0 %v822, 32
  %v1237 = vpop.permute.xlu0 %1236
  %1238 = vrot.lane.b32.xlu0 %v954, 32
  %v1239 = vpop.permute.xlu0 %1238
  %1240 = vrot.lane.b32.xlu0 %v1086, 32
  %v1241 = vpop.permute.xlu0 %1240
  %1242 = vrot.lane.b32.xlu0 %v1218, 32
  %v1243 = vpop.permute.xlu0 %1242
  %v1244 = vsel %vm55, %v1229, 0
  %v1246 = vsel %vm55, %v1231, 0
  %v1248 = vsel %vm55, %v1233, 0
  %v1250 = vsel %vm55, %v1235, 0
  %v1252 = vsel %vm55, %v1237, 0
  %v1254 = vsel %vm55, %v1239, 0
  %v1256 = vsel %vm55, %v1241, 0
  %v1258 = vsel %vm55, %v1243, 0
  %1260 = vmatpush.msra.mxu0 0.0
  %1261 = vmatpush.msra.mxu0 0.0
  %1262 = vmatpush.msra.mxu0 0.0
  %1263 = vmatpush.msra.mxu0 0.0
  %1264 = vmatpush.msra.mxu0 0.0
  %1265 = vmatpush.msra.mxu0 0.0
  %1266 = vmatpush.msra.mxu0 0.0
  %1267 = vmatpush.msra.mxu0 0.0
  %1268 = vmatpush.msra.mxu0 0.0
  %1269 = vmatpush.msra.mxu0 0.0
  %1270 = vmatpush.msra.mxu0 0.0
  %1271 = vmatpush.msra.mxu0 0.0
  %1272 = vmatpush.msra.mxu0 %v1222
  %1273 = vmatpush.msra.mxu0 %v1221
  %1274 = vmatpush.msra.mxu0 %v1220
  %1275 = vmatpush.msra.mxu0 %v1219
  %1276 = vmatmul.f32.gmra.mxu0 %v1244
  %v1277 = vpop.f32.mrf.mxu0
  %v1278 = vadd.f32 %v1225, %v1277
  %1279 = vmatmul.f32.gmra.mxu0 %v1246
  %v1280 = vpop.f32.mrf.mxu0
  %v1281 = vadd.f32 %v1225, %v1280
  %1282 = vmatmul.f32.gmra.mxu0 %v1248
  %v1283 = vpop.f32.mrf.mxu0
  %v1284 = vadd.f32 %v1225, %v1283
  %1285 = vmatmul.f32.gmra.mxu0 %v1250
  %v1286 = vpop.f32.mrf.mxu0
  %v1287 = vadd.f32 %v1225, %v1286
  %1288 = vmatmul.f32.gmra.mxu0 %v1252
  %v1289 = vpop.f32.mrf.mxu0
  %v1290 = vadd.f32 %v1225, %v1289
  %1291 = vmatmul.f32.gmra.mxu0 %v1254
  %v1292 = vpop.f32.mrf.mxu0
  %v1293 = vadd.f32 %v1225, %v1292
  %1294 = vmatmul.f32.gmra.mxu0 %v1256
  %v1295 = vpop.f32.mrf.mxu0
  %v1296 = vadd.f32 %v1225, %v1295
  %1297 = vmatmul.f32.gmra.mxu0 %v1258
  %v1298 = vpop.f32.mrf.mxu0
  %v1299 = vadd.f32 %v1225, %v1298
  %1300 = vdwg.mxu0
  %vm1301 = vcmask 408576
  %1302 = vst.msk [vmem:[%s9] sm:$0xff] %vm1301, %v1278
  %1303 = vst.msk [vmem:[%s9 + $0x8] sm:$0xff] %vm1301, %v1281
  %1304 = vst.msk [vmem:[%s9 + $0x10] sm:$0xff] %vm1301, %v1284
  %1305 = vst.msk [vmem:[%s9 + $0x18] sm:$0xff] %vm1301, %v1287
  %1306 = vst.msk [vmem:[%s9 + $0x20] sm:$0xff] %vm1301, %v1290
  %1307 = vst.msk [vmem:[%s9 + $0x28] sm:$0xff] %vm1301, %v1293
  %1308 = vst.msk [vmem:[%s9 + $0x30] sm:$0xff] %vm1301, %v1296
  %1309 = vst.msk [vmem:[%s9 + $0x38] sm:$0xff] %vm1301, %v1299
  %1311 = vst.msk [vmem:[%s10] sm:$0xff] %vm55, %v1151
  %1312 = vst.msk [vmem:[%s10 + $0x8] sm:$0xff] %vm55, %v1243
  %1315 = vrot.lane.b32.xlu0 %v1142, 96
  %v1316 = vpop.permute.xlu0 %1315
  %1317 = vrot.lane.b32.xlu0 %v1212, 96
  %v1318 = vpop.permute.xlu0 %1317
  %1321 = vst.msk [vmem:[%s11] sm:$0xff] %vm55, %v1316
  %1322 = vst.msk [vmem:[%s11 + $0x8] sm:$0xff] %vm55, %v1318
  // Predicated region
  $region38: #{decoder_lstm_forward.1} parent=0 // pred_check
    _
  $region39: #{decoder_lstm_forward.1} parent=0 // pred_check_branch
    %1324 = sbr.rel (0) target = $region41
  $region40: #{decoder_lstm_forward.1} parent=0 // pred_region
    _
  $region41: #{decoder_lstm_forward.1} parent=0 // pred_fallthru
    _
  // Predicated region
  $region42: #{decoder_lstm_forward.1} parent=0 // pred_check
    _
  $region43: #{decoder_lstm_forward.1} parent=0 // pred_check_branch
    %1326 = sbr.rel (0) target = $region45
  $region44: #{decoder_lstm_forward.1} parent=0 // pred_region
    _
  $region45: #{decoder_lstm_forward.1} parent=0 // pred_fallthru
    _
  // Predicated region
  $region46: #{decoder_lstm_forward.1} parent=0 // pred_check
    _
  $region47: #{decoder_lstm_forward.1} parent=0 // pred_check_branch
    %1328 = sbr.rel (0) target = $region49
  $region48: #{decoder_lstm_forward.1} parent=0 // pred_region
    _
  $region49: #{decoder_lstm_forward.1} parent=0 // pred_fallthru
    _
  // Predicated region
  $region50: #{decoder_lstm_forward.1} parent=0 // pred_check
    _
  $region51: #{decoder_lstm_forward.1} parent=0 // pred_check_branch
    %1330 = sbr.rel (0) target = $region53
  $region52: #{decoder_lstm_forward.1} parent=0 // pred_region
    _
  $region53: #{decoder_lstm_forward.1} parent=0 // pred_fallthru
    _
  // Predicated region
  $region54: #{decoder_lstm_forward.1} parent=0 // pred_check
    _
  $region55: #{decoder_lstm_forward.1} parent=0 // pred_check_branch
    %1332 = sbr.rel (0) target = $region57
  $region56: #{decoder_lstm_forward.1} parent=0 // pred_region
    _
  $region57: #{decoder_lstm_forward.1} parent=0 // pred_fallthru
    _
  // Predicated region
  $region58: #{decoder_lstm_forward.1} parent=0 // pred_check
    _
  $region59: #{decoder_lstm_forward.1} parent=0 // pred_check_branch
    %1334 = sbr.rel (0) target = $region61
  $region60: #{decoder_lstm_forward.1} parent=0 // pred_region
    _
  $region61: #{decoder_lstm_forward.1} parent=0 // pred_fallthru
    _

</llo_original>
